<compile_context>
chip_gen: v6e
topology: v6e:2x2x1
jax: 0.10.0
libtpu: 0.0.40
codegen_flags: <defaults>
</compile_context>

<pallas_src>
import functools

import jax
import jax.numpy as jnp
from jax.experimental import pallas as pl
from jax.experimental.pallas import tpu as pltpu


# ------------------------------ small helpers ------------------------------ #
def _round_up(n, m):
    return ((n + m - 1) // m) * m


def _pad_last(x, new_last):
    """Zero-pad the last (lane) dim of x up to new_last. Wrapper-side only."""
    pad = new_last - x.shape[-1]
    if pad == 0:
        return x
    return jnp.pad(x, [(0, 0)] * (x.ndim - 1) + [(0, pad)])


def _vmem_limit_bytes():
    """Per-TensorCore scoped-VMEM ceiling, generation aware with a safe fallback.
    v5e/v6e report 128 MiB physical -> 100 MiB limit; v7x reports 64 MiB/TC -> 48 MiB."""
    try:
        phys = int(pltpu.get_tpu_info().vmem_capacity_bytes)
    except Exception:  # query unavailable: assume the smallest (v7x per-TC) VMEM
        phys = 64 << 20
    return int(min(max(phys - (16 << 20), 32 << 20), 100 << 20))


def _pick_batch_tile(B, row_bytes, budget_bytes):
    """Pick a batch tile TB (multiple of 8, preferring multiples of 128) whose
    double-buffered footprint fits `budget_bytes`, and a padded batch BP such that
    the grid has an EVEN number of steps >= 2 (v7x 2-TensorCore split)."""
    B8 = _round_up(max(B, 1), 8)
    tb = (budget_bytes // max(row_bytes, 1)) // 8 * 8
    tb = int(max(8, min(tb, 512)))
    if tb >= 128:
        tb = (tb // 128) * 128                      # MXU-friendly M alignment
    tb = min(tb, _round_up(-(-B8 // 2), 8))         # force at least 2 grid steps
    steps = max(2, -(-B8 // tb))
    if steps % 2:                                   # even step count -> clean 2-way split
        steps += 1
    tb = max(8, _round_up(-(-B8 // steps), 8))      # never exceeds the budget-derived tb
    return tb, steps * tb


# ----------------------------- Pallas kernel ------------------------------- #
def decoder_lstm_kernel(
    enc_ref,      # (TB, LPAD, D)     encoder-outputs batch tile (compute dtype)
    w_attn_ref,   # (D, HP)           attn.weight^T, zero-padded H -> HP
    b_attn_ref,   # (1, HP)  f32
    v_ref,        # (1, HP)  f32      v.weight, zero-padded
    w_fused_ref,  # (D, 3*HP+LP)      [W_ir | W_iz | W_in | W_fc(weighted half)]^T
    b_fused_ref,  # (1, 3*HP+LP) f32  [b_ir+b_hr | b_iz+b_hz | b_in | b_fc]
    b_hn_ref,     # (1, HP)  f32
    w_fch_ref,    # (HP, LP)          fc_out.weight[:, :H]^T (output half), padded
    pred_ref,     # (TB, LP)  f32 out
    hidden_ref,   # (TB, HP)  f32 out
    a_ref,        # (TB, LA)  f32 out (attention weights, zero-padded L -> LA)
    *,
    l_true,       # static: true src_len (L may be sublane-padded to LPAD)
):
    TB, LPAD, D = enc_ref.shape
    HP = w_attn_ref.shape[1]
    LA = a_ref.shape[1]

    enc = enc_ref[...]
    # LPAD is a sublane multiple (wrapper guarantees it), so both reshapes below
    # are free view ops (no VMEM copy per tile).
    enc2 = enc.reshape(TB * LPAD, D)

    # ---- attention: energy = tanh(attn(enc)); scores = v(energy) ----
    # Padded lanes [H, HP) carry tanh(0+0)=0 and v=0 there, so they never contribute.
    # TODO(synk): if profiling shows the EUP slot saturating on v6e/v7x, compute this
    # tanh in bf16 (packed vregs) and cast back before the XLU reduce.
    energy = jnp.tanh(
        jnp.dot(enc2, w_attn_ref[...], preferred_element_type=jnp.float32)
        + b_attn_ref[...]
    ).reshape(TB, LPAD, HP)
    # Deliberately kept on the VPU/XLU: an (., HP) @ (HP, 1) matmul would be the worst
    # possible MXU shape (N = 1, lane-sparse result).
    scores = jnp.sum(energy * v_ref[...][None, :, :], axis=-1)        # (TB, LPAD) f32

    # Mask sublane-padded src positions so they get zero attention weight.
    if l_true < LPAD:
        lane = jax.lax.broadcasted_iota(jnp.int32, (TB, LPAD), 1)
        scores = jnp.where(lane < l_true, scores, jnp.float32(-1e30))

    # ---- softmax over src_len (dim=1), kept in f32 ----
    m = jnp.max(scores, axis=1, keepdims=True)
    e = jnp.exp(scores - m)
    a = e / jnp.sum(e, axis=1, keepdims=True)                         # (TB, LPAD)

    # Single lane-dense store of the attention weights (zero-padded to LA lanes).
    if LA == LPAD:
        a_ref[...] = a
    else:
        a_ref[...] = jnp.concatenate(
            [a, jnp.zeros((TB, LA - LPAD), jnp.float32)], axis=1)

    # ---- weighted = bmm(a.unsqueeze(1), enc) -> (TB, D) ----
    # VPU multiply + sublane reduce; free filler next to the MXU work at small L.
    weighted = jnp.sum(a[:, :, None] * enc, axis=1).astype(jnp.float32)

    # ---- ONE fused, wide MXU pass for everything consuming `weighted`:
    #      GRU input gates (r, z, n) + fc_out "weighted" half, biases folded in.
    g = (
        jnp.dot(weighted.astype(w_fused_ref.dtype), w_fused_ref[...],
                preferred_element_type=jnp.float32)
        + b_fused_ref[...]
    )                                                                 # (TB, 3HP+LP)

    # ---- single-step GRU, h0 = 0 (PyTorch gate order r,z,n; W_hh @ h0 == 0) ----
    # Slices are static and 128-lane aligned (HP, LP are multiples of 128).
    r = jax.nn.sigmoid(g[:, 0 * HP:1 * HP])
    z = jax.nn.sigmoid(g[:, 1 * HP:2 * HP])
    n = jnp.tanh(g[:, 2 * HP:3 * HP] + r * b_hn_ref[...])
    h = (1.0 - z) * n                          # + z * h0 with h0 == 0
    hidden_ref[...] = h                        # padded lanes are exactly 0

    # ---- prediction = fc_out(cat(output, weighted)):
    #      h @ W_fc[:, :H]^T  +  (weighted @ W_fc[:, H:]^T + b_fc)  [= tail of g]
    pred_ref[...] = (
        jnp.dot(h.astype(w_fch_ref.dtype), w_fch_ref[...],
                preferred_element_type=jnp.float32)
        + g[:, 3 * HP:]
    )


# ------------------------------- wrapper ----------------------------------- #
def decoder_lstm_forward(encoder_outputs, params, *, compute_dtype=jnp.bfloat16):
    B, L, D = encoder_outputs.shape
    H = params["w_attn"].shape[0]          # dec_hid_dim
    LDMK = params["w_fc"].shape[0]
    f32 = jnp.float32
    itemsize = jnp.dtype(compute_dtype).itemsize

    HP = _round_up(H, 128)                 # lane-dense hidden width
    LP = _round_up(LDMK, 128)              # lane-dense landmark width
    LA = _round_up(L, 128)                 # lane-dense attention-weight width
    sub = 16 if itemsize == 2 else 8       # sublane multiple for the compute dtype
    LPAD = _round_up(L, sub)               # src_len padded so in-kernel reshapes are free

    # --- plain-JAX glue: transpose / zero-pad / fuse parameters (HBM side) ---
    w_attn = _pad_last(params["w_attn"].T.astype(f32), HP)             # (D, HP)
    b_attn = _pad_last(params["b_attn"].reshape(1, H).astype(f32), HP)
    v_w = _pad_last(params["v_w"].reshape(1, H).astype(f32), HP)

    w_ih, b_ih, b_hh = params["w_ih"], params["b_ih"], params["b_hh"]
    w_fc, b_fc = params["w_fc"], params["b_fc"]

    wT_ir = _pad_last(w_ih[0 * H:1 * H].T, HP)                         # (D, HP)
    wT_iz = _pad_last(w_ih[1 * H:2 * H].T, HP)
    wT_in = _pad_last(w_ih[2 * H:3 * H].T, HP)
    wT_fc_w = _pad_last(w_fc[:, H:H + D].T, LP)                        # (D, LP)
    w_fused = jnp.concatenate([wT_ir, wT_iz, wT_in, wT_fc_w], axis=1)  # (D, 3HP+LP)

    b_r = _pad_last((b_ih[0 * H:1 * H] + b_hh[0 * H:1 * H]).reshape(1, H), HP)
    b_z = _pad_last((b_ih[1 * H:2 * H] + b_hh[1 * H:2 * H]).reshape(1, H), HP)
    b_in = _pad_last(b_ih[2 * H:3 * H].reshape(1, H), HP)
    b_fc2 = _pad_last(b_fc.reshape(1, LDMK), LP)
    b_fused = jnp.concatenate([b_r, b_z, b_in, b_fc2], axis=1).astype(f32)
    b_hn = _pad_last(b_hh[2 * H:3 * H].reshape(1, H), HP).astype(f32)

    wT_fc_h = _pad_last(jnp.pad(w_fc[:, :H].T, ((0, HP - H), (0, 0))), LP)  # (HP, LP)

    # MXU operands in the compute dtype (bf16 halves DMA bytes; all MXU generations
    # take bf16 with f32 accumulation); activations / softmax stay f32 in-kernel.
    w_attn = w_attn.astype(compute_dtype)
    w_fused = w_fused.astype(compute_dtype)
    wT_fc_h = wT_fc_h.astype(compute_dtype)

    # --- VMEM budgeting with lane/sublane-padded footprints (native (8,128) tiles) ---
    vmem_limit = _vmem_limit_bytes()
    resident_bytes = 2 * sum(                      # resident weights (x2: buffer pair)
        int(x.size) * x.dtype.itemsize
        for x in (w_attn, b_attn, v_w, w_fused, b_fused, b_hn, wT_fc_h))
    enc_row = _round_up(LPAD, sub) * _round_up(D, 128) * itemsize      # true VMEM bytes/row
    out_row = (LP + HP + LA) * 4
    row_bytes = 2 * (enc_row + out_row)            # double-buffered in + out tiles
    budget = max(2 << 20, vmem_limit - resident_bytes - (6 << 20))
    TB, BP = _pick_batch_tile(B, row_bytes, budget)
    grid = (BP // TB,)

    # Pad batch (garbage rows sliced off afterwards) and src_len (masked in-kernel).
    enc_in = encoder_outputs.astype(compute_dtype)
    if BP != B or LPAD != L:
        enc_in = jnp.pad(enc_in, ((0, BP - B), (0, LPAD - L), (0, 0)))

    def resident(*block_shape):                    # weights: same block every grid step
        return pl.BlockSpec(block_shape, lambda b: (0,) * len(block_shape))

    NF = 3 * HP + LP
    in_specs = [
        pl.BlockSpec((TB, LPAD, D), lambda b: (b, 0, 0)),   # enc: tiled on batch
        resident(D, HP), resident(1, HP), resident(1, HP),
        resident(D, NF), resident(1, NF),
        resident(1, HP), resident(HP, LP),
    ]
    out_specs = (
        pl.BlockSpec((TB, LP), lambda b: (b, 0)),
        pl.BlockSpec((TB, HP), lambda b: (b, 0)),
        pl.BlockSpec((TB, LA), lambda b: (b, 0)),
    )
    out_shapes = (
        jax.ShapeDtypeStruct((BP, LP), f32),
        jax.ShapeDtypeStruct((BP, HP), f32),
        jax.ShapeDtypeStruct((BP, LA), f32),
    )

    kernel = functools.partial(decoder_lstm_kernel, l_true=L)
    pred_p, hidden_p, a_p = pl.pallas_call(
        kernel,
        grid=grid,
        in_specs=in_specs,
        out_specs=out_specs,
        out_shape=out_shapes,
        compiler_params=pltpu.CompilerParams(
            # Even number of batch tiles -> both v7x TensorCores get work;
            # harmless on single-TC v5e/v6e.
            dimension_semantics=("parallel",),
            vmem_limit_bytes=vmem_limit,
        ),
    )(enc_in, w_attn, b_attn, v_w, w_fused, b_fused, b_hn, wT_fc_h)

    # strip padding; match PyTorch return shapes (B,1,LDMK), (B,H), (B,1,L)
    pred = pred_p[:B, :LDMK].reshape(B, 1, LDMK)
    hidden = hidden_p[:B, :H]
    a = a_p[:B, :L].reshape(B, 1, L)
    return pred, hidden, a


# --------------------------- pure-JAX reference ----------------------------- #
def decoder_lstm_reference(enc, params):
    H = params["w_attn"].shape[0]
    energy = jnp.tanh(enc @ params["w_attn"].T + params["b_attn"])
    scores = (energy @ params["v_w"].T)[..., 0]
    a = jax.nn.softmax(scores, axis=1)
    weighted = jnp.einsum("bl,bld->bd", a, enc)
    w_ih, b_ih, b_hh = params["w_ih"], params["b_ih"], params["b_hh"]
    gx = weighted @ w_ih.T + b_ih
    r = jax.nn.sigmoid(gx[:, :H] + b_hh[:H])
    z = jax.nn.sigmoid(gx[:, H:2 * H] + b_hh[H:2 * H])
    n = jnp.tanh(gx[:, 2 * H:] + r * b_hh[2 * H:])
    h = (1.0 - z) * n
    pred = jnp.concatenate([h, weighted], axis=1) @ params["w_fc"].T + params["b_fc"]
    return pred[:, None, :], h, a[:, None, :]


# --------------------------------- main ------------------------------------ #
if __name__ == "__main__":
    # small, shape-consistent version of the module:
    B, L = 2, 8
    ENC_HID = 32          # encoder feature dim (= GRU input size)
    DEC_HID = 32          # GRU hidden / attn output dim
    LDMK = 40             # scaled-down stand-in for 136*5

    key = jax.random.PRNGKey(0)
    ks = jax.random.split(key, 9)

    def uinit(k, shape, fan_in):
        bound = 1.0 / jnp.sqrt(jnp.float32(fan_in))
        return jax.random.uniform(k, shape, jnp.float32, -bound, bound)

    params = {
        "w_attn": uinit(ks[0], (DEC_HID, ENC_HID), ENC_HID),
        "b_attn": uinit(ks[1], (DEC_HID,), ENC_HID),
        "v_w":    uinit(ks[2], (1, DEC_HID), DEC_HID),
        "w_ih":   uinit(ks[3], (3 * DEC_HID, ENC_HID), DEC_HID),
        "b_ih":   uinit(ks[4], (3 * DEC_HID,), DEC_HID),
        "b_hh":   uinit(ks[5], (3 * DEC_HID,), DEC_HID),
        "w_fc":   uinit(ks[6], (LDMK, ENC_HID + DEC_HID), ENC_HID + DEC_HID),
        "b_fc":   uinit(ks[7], (LDMK,), ENC_HID + DEC_HID),
    }

    encoder_outputs = jax.random.normal(ks[8], (B, L, ENC_HID), jnp.float32)
    pred_r, hidden_r, a_r = decoder_lstm_reference(encoder_outputs, params)

    # f32 MXU operands: tight check (also exercises LPAD == L path)
    pred, hidden, a = decoder_lstm_forward(encoder_outputs, params,
                                           compute_dtype=jnp.float32)
    jax.block_until_ready((pred, hidden, a))
    assert pred.shape == (B, 1, LDMK) and hidden.shape == (B, DEC_HID) and a.shape == (B, 1, L)
    assert jnp.allclose(pred, pred_r, atol=1e-4, rtol=1e-4)
    assert jnp.allclose(hidden, hidden_r, atol=1e-4, rtol=1e-4)
    assert jnp.allclose(a, a_r, atol=1e-5, rtol=1e-4)

    # bf16 default (halved enc DMA bytes, f32 accumulate, f32 activations):
    # loose check; also exercises the sublane-padded-L masking path (LPAD=16 > L=8).
    pred_b, hidden_b, a_b = decoder_lstm_forward(encoder_outputs, params)
    jax.block_until_ready((pred_b, hidden_b, a_b))
    assert pred_b.shape == (B, 1, LDMK) and hidden_b.shape == (B, DEC_HID) and a_b.shape == (B, 1, L)
    assert jnp.allclose(pred_b, pred_r, atol=5e-2, rtol=5e-2)
    assert jnp.allclose(hidden_b, hidden_r, atol=5e-2, rtol=5e-2)
    assert jnp.allclose(a_b, a_r, atol=3e-2, rtol=5e-2)

    print("KERNEL_OK")
</pallas_src>

<mosaic_0001>
module attributes {stable_mosaic.version = 11 : i64} {
  func.func @decoder_lstm_kernel(%arg0: i32, %arg1: memref<8x8x32xf32, #tpu.memory_space<vmem>>, %arg2: memref<32x128xf32, #tpu.memory_space<vmem>>, %arg3: memref<1x128xf32, #tpu.memory_space<vmem>>, %arg4: memref<1x128xf32, #tpu.memory_space<vmem>>, %arg5: memref<32x512xf32, #tpu.memory_space<vmem>>, %arg6: memref<1x512xf32, #tpu.memory_space<vmem>>, %arg7: memref<1x128xf32, #tpu.memory_space<vmem>>, %arg8: memref<128x128xf32, #tpu.memory_space<vmem>>, %arg9: memref<8x128xf32, #tpu.memory_space<vmem>>, %arg10: memref<8x128xf32, #tpu.memory_space<vmem>>, %arg11: memref<8x128xf32, #tpu.memory_space<vmem>>) attributes {dimension_semantics = [#tpu.dimension_semantics<parallel>], iteration_bounds = array<i64: 2>, scalar_prefetch = 0 : i64, scratch_operands = 0 : i64, tpu.core_type = #tpu.core_type<tc>, window_params = [{transform_indices = @transform_0, window_bounds = array<i64: 8, 8, 32>}, {pipeline_mode = #tpu.pipeline_mode<synchronous>, transform_indices = @transform_1, window_bounds = array<i64: 32, 128>}, {pipeline_mode = #tpu.pipeline_mode<synchronous>, transform_indices = @transform_2, window_bounds = array<i64: 1, 128>}, {pipeline_mode = #tpu.pipeline_mode<synchronous>, transform_indices = @transform_3, window_bounds = array<i64: 1, 128>}, {pipeline_mode = #tpu.pipeline_mode<synchronous>, transform_indices = @transform_4, window_bounds = array<i64: 32, 512>}, {pipeline_mode = #tpu.pipeline_mode<synchronous>, transform_indices = @transform_5, window_bounds = array<i64: 1, 512>}, {pipeline_mode = #tpu.pipeline_mode<synchronous>, transform_indices = @transform_6, window_bounds = array<i64: 1, 128>}, {pipeline_mode = #tpu.pipeline_mode<synchronous>, transform_indices = @transform_7, window_bounds = array<i64: 128, 128>}, {transform_indices = @transform_8, window_bounds = array<i64: 8, 128>}, {transform_indices = @transform_9, window_bounds = array<i64: 8, 128>}, {transform_indices = @transform_10, window_bounds = array<i64: 8, 128>}]} {
    %c0 = arith.constant 0 : index
    %c0_0 = arith.constant 0 : index
    %c0_1 = arith.constant 0 : index
    %0 = vector.load %arg1[%c0, %c0_0, %c0_1] : memref<8x8x32xf32, #tpu.memory_space<vmem>>, vector<8x8x32xf32>
    %1 = vector.shape_cast %0 : vector<8x8x32xf32> to vector<64x32xf32>
    %c0_2 = arith.constant 0 : index
    %c0_3 = arith.constant 0 : index
    %2 = vector.load %arg2[%c0_2, %c0_3] : memref<32x128xf32, #tpu.memory_space<vmem>>, vector<32x128xf32>
    %cst = arith.constant dense<0.000000e+00> : vector<64x128xf32>
    %3 = tpu.matmul %1, %2, %cst {dimension_numbers = #tpu.dot_dimension_numbers<[1], [0], [0], [1], [0, 0, 1, 1], [], []>} : vector<64x32xf32>, vector<32x128xf32>, vector<64x128xf32> -> vector<64x128xf32>
    %c0_4 = arith.constant 0 : index
    %c0_5 = arith.constant 0 : index
    %4 = vector.load %arg3[%c0_4, %c0_5] : memref<1x128xf32, #tpu.memory_space<vmem>>, vector<1x128xf32>
    %5 = vector.broadcast %4 : vector<1x128xf32> to vector<64x128xf32>
    %6 = arith.addf %3, %5 : vector<64x128xf32>
    %7 = math.tanh %6 : vector<64x128xf32>
    %8 = vector.shape_cast %7 : vector<64x128xf32> to vector<8x8x128xf32>
    %c0_6 = arith.constant 0 : index
    %c0_7 = arith.constant 0 : index
    %9 = vector.load %arg4[%c0_6, %c0_7] : memref<1x128xf32, #tpu.memory_space<vmem>>, vector<1x128xf32>
    %10 = vector.shape_cast %9 : vector<1x128xf32> to vector<1x1x128xf32>
    %11 = vector.broadcast %10 : vector<1x1x128xf32> to vector<8x8x128xf32>
    %12 = arith.mulf %8, %11 : vector<8x8x128xf32>
    %cst_8 = arith.constant dense<0.000000e+00> : vector<8x8xf32>
    %13 = vector.multi_reduction <add>, %12, %cst_8 [2] : vector<8x8x128xf32> to vector<8x8xf32>
    %cst_9 = arith.constant dense<0xFF800000> : vector<8xf32>
    %14 = vector.multi_reduction <maximumf>, %13, %cst_9 [1] : vector<8x8xf32> to vector<8xf32>
    %15 = vector.shape_cast %14 : vector<8xf32> to vector<8x1xf32>
    %16 = vector.broadcast %15 : vector<8x1xf32> to vector<8x8xf32>
    %17 = arith.subf %13, %16 : vector<8x8xf32>
    %18 = math.exp %17 : vector<8x8xf32>
    %cst_10 = arith.constant dense<0.000000e+00> : vector<8xf32>
    %19 = vector.multi_reduction <add>, %18, %cst_10 [1] : vector<8x8xf32> to vector<8xf32>
    %20 = vector.shape_cast %19 : vector<8xf32> to vector<8x1xf32>
    %21 = vector.broadcast %20 : vector<8x1xf32> to vector<8x8xf32>
    %22 = arith.divf %18, %21 : vector<8x8xf32>
    %cst_11 = arith.constant 0.000000e+00 : f32
    %23 = vector.broadcast %cst_11 : f32 to vector<8x120xf32>
    %24 = tpu.concatenate %22, %23 in 1 : vector<8x8xf32>, vector<8x120xf32> -> vector<8x128xf32>
    %c0_12 = arith.constant 0 : index
    %c0_13 = arith.constant 0 : index
    %25 = vector.load %arg11[%c0_12, %c0_13] : memref<8x128xf32, #tpu.memory_space<vmem>>, vector<8x128xf32>
    tpu.vector_store %arg11[%c0_12, %c0_13], %24 {strides = array<i32>} : memref<8x128xf32, #tpu.memory_space<vmem>>, vector<8x128xf32>,
    %26 = vector.shape_cast %22 : vector<8x8xf32> to vector<8x8x1xf32>
    %27 = vector.broadcast %26 : vector<8x8x1xf32> to vector<8x8x32xf32>
    %28 = arith.mulf %27, %0 : vector<8x8x32xf32>
    %cst_14 = arith.constant dense<0.000000e+00> : vector<8x32xf32>
    %29 = vector.multi_reduction <add>, %28, %cst_14 [1] : vector<8x8x32xf32> to vector<8x32xf32>
    %c0_15 = arith.constant 0 : index
    %c0_16 = arith.constant 0 : index
    %30 = vector.load %arg5[%c0_15, %c0_16] : memref<32x512xf32, #tpu.memory_space<vmem>>, vector<32x512xf32>
    %cst_17 = arith.constant dense<0.000000e+00> : vector<8x512xf32>
    %31 = tpu.matmul %29, %30, %cst_17 {dimension_numbers = #tpu.dot_dimension_numbers<[1], [0], [0], [1], [0, 0, 1, 1], [], []>} : vector<8x32xf32>, vector<32x512xf32>, vector<8x512xf32> -> vector<8x512xf32>
    %c0_18 = arith.constant 0 : index
    %c0_19 = arith.constant 0 : index
    %32 = vector.load %arg6[%c0_18, %c0_19] : memref<1x512xf32, #tpu.memory_space<vmem>>, vector<1x512xf32>
    %33 = vector.broadcast %32 : vector<1x512xf32> to vector<8x512xf32>
    %34 = arith.addf %31, %33 : vector<8x512xf32>
    %35 = vector.extract_strided_slice %34 {offsets = [0, 0], sizes = [8, 128], strides = [1, 1]} : vector<8x512xf32> to vector<8x128xf32>
    %36 = arith.negf %35 : vector<8x128xf32>
    %37 = math.exp %36 : vector<8x128xf32>
    %cst_20 = arith.constant 1.000000e+00 : f32
    %38 = vector.broadcast %cst_20 : f32 to vector<8x128xf32>
    %39 = arith.addf %38, %37 : vector<8x128xf32>
    %40 = arith.divf %38, %39 : vector<8x128xf32>
    %41 = vector.extract_strided_slice %34 {offsets = [0, 128], sizes = [8, 128], strides = [1, 1]} : vector<8x512xf32> to vector<8x128xf32>
    %42 = arith.negf %41 : vector<8x128xf32>
    %43 = math.exp %42 : vector<8x128xf32>
    %cst_21 = arith.constant 1.000000e+00 : f32
    %44 = vector.broadcast %cst_21 : f32 to vector<8x128xf32>
    %45 = arith.addf %44, %43 : vector<8x128xf32>
    %46 = arith.divf %44, %45 : vector<8x128xf32>
    %47 = vector.extract_strided_slice %34 {offsets = [0, 256], sizes = [8, 128], strides = [1, 1]} : vector<8x512xf32> to vector<8x128xf32>
    %c0_22 = arith.constant 0 : index
    %c0_23 = arith.constant 0 : index
    %48 = vector.load %arg7[%c0_22, %c0_23] : memref<1x128xf32, #tpu.memory_space<vmem>>, vector<1x128xf32>
    %49 = vector.broadcast %48 : vector<1x128xf32> to vector<8x128xf32>
    %50 = arith.mulf %40, %49 : vector<8x128xf32>
    %51 = arith.addf %47, %50 : vector<8x128xf32>
    %52 = math.tanh %51 : vector<8x128xf32>
    %cst_24 = arith.constant 1.000000e+00 : f32
    %53 = vector.broadcast %cst_24 : f32 to vector<8x128xf32>
    %54 = arith.subf %53, %46 : vector<8x128xf32>
    %55 = arith.mulf %54, %52 : vector<8x128xf32>
    %c0_25 = arith.constant 0 : index
    %c0_26 = arith.constant 0 : index
    %56 = vector.load %arg10[%c0_25, %c0_26] : memref<8x128xf32, #tpu.memory_space<vmem>>, vector<8x128xf32>
    tpu.vector_store %arg10[%c0_25, %c0_26], %55 {strides = array<i32>} : memref<8x128xf32, #tpu.memory_space<vmem>>, vector<8x128xf32>,
    %c0_27 = arith.constant 0 : index
    %c0_28 = arith.constant 0 : index
    %57 = vector.load %arg8[%c0_27, %c0_28] : memref<128x128xf32, #tpu.memory_space<vmem>>, vector<128x128xf32>
    %cst_29 = arith.constant dense<0.000000e+00> : vector<8x128xf32>
    %58 = tpu.matmul %55, %57, %cst_29 {dimension_numbers = #tpu.dot_dimension_numbers<[1], [0], [0], [1], [0, 0, 1, 1], [], []>} : vector<8x128xf32>, vector<128x128xf32>, vector<8x128xf32> -> vector<8x128xf32>
    %59 = vector.extract_strided_slice %34 {offsets = [0, 384], sizes = [8, 128], strides = [1, 1]} : vector<8x512xf32> to vector<8x128xf32>
    %60 = arith.addf %58, %59 : vector<8x128xf32>
    %c0_30 = arith.constant 0 : index
    %c0_31 = arith.constant 0 : index
    %61 = vector.load %arg9[%c0_30, %c0_31] : memref<8x128xf32, #tpu.memory_space<vmem>>, vector<8x128xf32>
    tpu.vector_store %arg9[%c0_30, %c0_31], %60 {strides = array<i32>} : memref<8x128xf32, #tpu.memory_space<vmem>>, vector<8x128xf32>,
    return
  }
  func.func @transform_0(%arg0: i32) -> (i32, i32, i32) {
    %c0_i32 = arith.constant 0 : i32
    %c0_i32_0 = arith.constant 0 : i32
    %c0_i32_1 = arith.constant 0 : i32
    return %arg0, %c0_i32, %c0_i32_0 : i32, i32, i32
  }
  func.func @transform_1(%arg0: i32) -> (i32, i32) {
    %c0_i32 = arith.constant 0 : i32
    %c0_i32_0 = arith.constant 0 : i32
    %c0_i32_1 = arith.constant 0 : i32
    return %c0_i32, %c0_i32_0 : i32, i32
  }
  func.func @transform_2(%arg0: i32) -> (i32, i32) {
    %c0_i32 = arith.constant 0 : i32
    %c0_i32_0 = arith.constant 0 : i32
    %c0_i32_1 = arith.constant 0 : i32
    return %c0_i32, %c0_i32_0 : i32, i32
  }
  func.func @transform_3(%arg0: i32) -> (i32, i32) {
    %c0_i32 = arith.constant 0 : i32
    %c0_i32_0 = arith.constant 0 : i32
    %c0_i32_1 = arith.constant 0 : i32
    return %c0_i32, %c0_i32_0 : i32, i32
  }
  func.func @transform_4(%arg0: i32) -> (i32, i32) {
    %c0_i32 = arith.constant 0 : i32
    %c0_i32_0 = arith.constant 0 : i32
    %c0_i32_1 = arith.constant 0 : i32
    return %c0_i32, %c0_i32_0 : i32, i32
  }
  func.func @transform_5(%arg0: i32) -> (i32, i32) {
    %c0_i32 = arith.constant 0 : i32
    %c0_i32_0 = arith.constant 0 : i32
    %c0_i32_1 = arith.constant 0 : i32
    return %c0_i32, %c0_i32_0 : i32, i32
  }
  func.func @transform_6(%arg0: i32) -> (i32, i32) {
    %c0_i32 = arith.constant 0 : i32
    %c0_i32_0 = arith.constant 0 : i32
    %c0_i32_1 = arith.constant 0 : i32
    return %c0_i32, %c0_i32_0 : i32, i32
  }
  func.func @transform_7(%arg0: i32) -> (i32, i32) {
    %c0_i32 = arith.constant 0 : i32
    %c0_i32_0 = arith.constant 0 : i32
    %c0_i32_1 = arith.constant 0 : i32
    return %c0_i32, %c0_i32_0 : i32, i32
  }
  func.func @transform_8(%arg0: i32) -> (i32, i32) {
    %c0_i32 = arith.constant 0 : i32
    %c0_i32_0 = arith.constant 0 : i32
    return %arg0, %c0_i32 : i32, i32
  }
  func.func @transform_9(%arg0: i32) -> (i32, i32) {
    %c0_i32 = arith.constant 0 : i32
    %c0_i32_0 = arith.constant 0 : i32
    return %arg0, %c0_i32 : i32, i32
  }
  func.func @transform_10(%arg0: i32) -> (i32, i32) {
    %c0_i32 = arith.constant 0 : i32
    %c0_i32_0 = arith.constant 0 : i32
    return %arg0, %c0_i32 : i32, i32
  }
}

</mosaic_0001>

<llo_original>
// kernel: tpu_custom_call.1
$region0: #{tpu_custom_call.1}
  #allocation0 [shape = 'u32[]', space=smem, size = 0x4, offset = 0x4, fixed_abs, tag = 'smem constant byte address 0x4 - core index']
  #allocation1 [shape = 'u32[144,128]{1,0:T(1,128)}', space=vmem, size = 0x12000, scoped, tag = 'internal scratch']
  %s0 = inlined_call_operand.hbm [shape: f32[16,8,32], index: 0, kind: input, shape index: {}]
  %s1 = inlined_call_operand.hbm [shape: f32[32,128], index: 1, kind: input, shape index: {}]
  %s2 = inlined_call_operand.vmem [shape: f32[1,128], index: 2, kind: input, shape index: {}]
  %s3 = inlined_call_operand.vmem [shape: f32[1,128], index: 3, kind: input, shape index: {}]
  %s4 = inlined_call_operand.hbm [shape: f32[32,512], index: 4, kind: input, shape index: {}]
  %s5 = inlined_call_operand.vmem [shape: f32[1,512], index: 5, kind: input, shape index: {}]
  %s6 = inlined_call_operand.vmem [shape: f32[1,128], index: 6, kind: input, shape index: {}]
  %s7 = inlined_call_operand.hbm [shape: f32[128,128], index: 7, kind: input, shape index: {}]
  %s8 = inlined_call_operand.hbm [shape: f32[16,128], index: 8, kind: output, shape index: {0}]
  %s9 = inlined_call_operand.hbm [shape: f32[16,128], index: 9, kind: output, shape index: {1}]
  %s10 = inlined_call_operand.hbm [shape: f32[16,128], index: 10, kind: output, shape index: {2}]
  %11 = xla_tuple %s8, %s9, %s10
  %s12 = sld [smem:[#allocation0]]
  $region97: #{tpu_custom_call.1} parent=0
    _
  %s14 = ssub.s32 1, %s12
  %s15 = scalar_select 0, %s14, %s12
  $region1: #{tpu_custom_call.1} parent=0
    #allocation2 [shape = 'u8[65536]{0}', space=vmem, size = 0x10000, scoped, tag = 'input window, operand 0']
    #allocation3 [shape = 's32[2]{0}', space=sflag, size = 0x8, scoped, tag = 'scoped memory for tpu_custom_call.1']
    #allocation4 [shape = 's32[2]{0}', space=sflag, size = 0x8, scoped, tag = 'scoped memory for tpu_custom_call.1']
    #allocation5 [shape = 'u8[16384]{0}', space=vmem, size = 0x4000, scoped, tag = 'input window, operand 1, single buffered']
    #allocation6 [shape = 's32[1]{0}', space=sflag, size = 0x4, scoped, tag = 'scoped memory for tpu_custom_call.1']
    #allocation7 [shape = 'u8[65536]{0}', space=vmem, size = 0x10000, scoped, tag = 'input window, operand 4, single buffered']
    #allocation8 [shape = 'u8[65536]{0}', space=vmem, size = 0x10000, scoped, tag = 'input window, operand 7, single buffered']
    #allocation9 [shape = 's32[1]{0}', space=sflag, size = 0x4, scoped, tag = 'scoped memory for tpu_custom_call.1']
    #allocation10 [shape = 'u8[8192]{0}', space=vmem, size = 0x2000, scoped, tag = 'output window, operand 0']
    #allocation11 [shape = 'u8[8192]{0}', space=vmem, size = 0x2000, scoped, tag = 'output window, operand 1']
    #allocation12 [shape = 's32[2]{0}', space=sflag, size = 0x8, scoped, tag = 'scoped memory for tpu_custom_call.1']
    #allocation13 [shape = 'u8[8192]{0}', space=vmem, size = 0x2000, scoped, tag = 'output window, operand 2']
    %16 = vsyncpa [#allocation3], 0
    %s17 = scalar_lea.sflag [#allocation3], 1
    %18 = vsyncpa %s17, 0
    %19 = vsyncpa [#allocation6], 0
    %20 = vsyncpa [#allocation9], 0
    %21 = vsyncpa [#allocation4], 0
    %s22 = scalar_lea.sflag [#allocation4], 1
    %23 = vsyncpa %s22, 0
    %24 = vsyncpa [#allocation12], 0
    %s25 = scalar_lea.sflag [#allocation12], 1
    %26 = vsyncpa %s25, 0
    loop: start=0, step=1, limit=4
    $region2: #{tpu_custom_call.1} parent=1 // loop_pre_header
      _
    $region3: #{tpu_custom_call.1} parent=1 // loop_header
      %s28 = sphi 0, %s32
      %p29 = scmp.ge.s32.totalorder %s28, 4
      %s38 = sphi 0, %s40
      %s41 = sphi 0, %s38
      %s42 = sphi 0, %s41
      %s58 = sphi 0, %s42
      %s62 = sphi 0, %s62
      %s64 = sphi 0, %s62
      %s65 = sphi 0, %s64
      %s79 = sphi 0, %s65
      %s83 = sphi 0, %s83
      %s85 = sphi 0, %s83
      %s86 = sphi 0, %s85
      %s100 = sphi 0, %s86
      %s104 = sphi 0, %s104
      %s106 = sphi 0, %s104
      %s107 = sphi 0, %s106
      %s121 = sphi 0, %s107
      %s125 = sphi 0, %s125
      %s127 = sphi 0, %s125
      %s128 = sphi 0, %s127
      %s142 = sphi 0, %s128
      %s146 = sphi 0, %s146
      %s148 = sphi 0, %s146
      %s149 = sphi 0, %s148
      %s163 = sphi 0, %s149
      %s167 = sphi 0, %s167
      %s169 = sphi 0, %s167
      %s170 = sphi 0, %s169
      %s184 = sphi 0, %s170
      %s188 = sphi 0, %s188
      %s190 = sphi 0, %s188
      %s191 = sphi 0, %s190
      %s205 = sphi 0, %s191
      %s211 = sphi 0, %s213
      %s214 = sphi 0, %s211
      %s215 = sphi 0, %s214
      %s231 = sphi 0, %s215
      %s237 = sphi 0, %s239
      %s240 = sphi 0, %s237
      %s241 = sphi 0, %s240
      %s257 = sphi 0, %s241
      %s263 = sphi 0, %s265
      %s266 = sphi 0, %s263
      %s267 = sphi 0, %s266
      %s283 = sphi 0, %s267
    $region4: #{tpu_custom_call.1} parent=1 // loop_header_branch
      %31 = sbr.rel (%p29) target = $region8
    $region5: #{tpu_custom_call.1} parent=1 // loop_body
      %s33 = ssub.s32 %s28, 1
      %s34 = ssub.s32 %s28, 2
      %s35 = sadd.s32 %s28, 1
      %s36 = ssub.s32 %s28, %s35
      %p37 = scmp.eq.s32.totalorder %s36, 0
      %s39 = sadd.s32 %s38, 1
      %s40 = scalar_select %p37, %s38, %s39
      %p43 = pneg %p37
      %p44 = scmp.eq.s32.totalorder %s28, 1
      %p45 = por %p43, %p44
      %p46 = scmp.ne.s32.totalorder %s38, %s41
      %p47 = scmp.eq.s32.totalorder %s28, 0
      %p48 = por %p46, %p47
      %p49 = scmp.ne.s32.totalorder %s38, %s41
      %p50 = scmp.eq.s32.totalorder %s33, 1
      %p51 = por %p49, %p50
      %p52 = scmp.ne.s32.totalorder %s41, %s42
      %p53 = scmp.eq.s32.totalorder %s33, 0
      %p54 = por %p52, %p53
      %p55 = scmp.ne.s32.totalorder %s41, %s42
      %p56 = scmp.eq.s32.totalorder %s34, 1
      %p57 = por %p55, %p56
      %p59 = scmp.ne.s32.totalorder %s42, %s58
      %p60 = scmp.eq.s32.totalorder %s34, 0
      %p61 = por %p59, %p60
      %s63 = sadd.s32 %s62, 1
      %p66 = scmp.eq.s32.totalorder %s28, 1
      %p67 = scmp.ne.s32.totalorder %s62, %s64
      %p68 = scmp.eq.s32.totalorder %s28, 0
      %p69 = por %p67, %p68
      %p70 = scmp.ne.s32.totalorder %s62, %s64
      %p71 = scmp.eq.s32.totalorder %s33, 1
      %p72 = por %p70, %p71
      %p73 = scmp.ne.s32.totalorder %s64, %s65
      %p74 = scmp.eq.s32.totalorder %s33, 0
      %p75 = por %p73, %p74
      %p76 = scmp.ne.s32.totalorder %s64, %s65
      %p77 = scmp.eq.s32.totalorder %s34, 1
      %p78 = por %p76, %p77
      %p80 = scmp.ne.s32.totalorder %s65, %s79
      %p81 = scmp.eq.s32.totalorder %s34, 0
      %p82 = por %p80, %p81
      %s84 = sadd.s32 %s83, 1
      %p87 = scmp.eq.s32.totalorder %s28, 1
      %p88 = scmp.ne.s32.totalorder %s83, %s85
      %p89 = scmp.eq.s32.totalorder %s28, 0
      %p90 = por %p88, %p89
      %p91 = scmp.ne.s32.totalorder %s83, %s85
      %p92 = scmp.eq.s32.totalorder %s33, 1
      %p93 = por %p91, %p92
      %p94 = scmp.ne.s32.totalorder %s85, %s86
      %p95 = scmp.eq.s32.totalorder %s33, 0
      %p96 = por %p94, %p95
      %p97 = scmp.ne.s32.totalorder %s85, %s86
      %p98 = scmp.eq.s32.totalorder %s34, 1
      %p99 = por %p97, %p98
      %p101 = scmp.ne.s32.totalorder %s86, %s100
      %p102 = scmp.eq.s32.totalorder %s34, 0
      %p103 = por %p101, %p102
      %s105 = sadd.s32 %s104, 1
      %p108 = scmp.eq.s32.totalorder %s28, 1
      %p109 = scmp.ne.s32.totalorder %s104, %s106
      %p110 = scmp.eq.s32.totalorder %s28, 0
      %p111 = por %p109, %p110
      %p112 = scmp.ne.s32.totalorder %s104, %s106
      %p113 = scmp.eq.s32.totalorder %s33, 1
      %p114 = por %p112, %p113
      %p115 = scmp.ne.s32.totalorder %s106, %s107
      %p116 = scmp.eq.s32.totalorder %s33, 0
      %p117 = por %p115, %p116
      %p118 = scmp.ne.s32.totalorder %s106, %s107
      %p119 = scmp.eq.s32.totalorder %s34, 1
      %p120 = por %p118, %p119
      %p122 = scmp.ne.s32.totalorder %s107, %s121
      %p123 = scmp.eq.s32.totalorder %s34, 0
      %p124 = por %p122, %p123
      %s126 = sadd.s32 %s125, 1
      %p129 = scmp.eq.s32.totalorder %s28, 1
      %p130 = scmp.ne.s32.totalorder %s125, %s127
      %p131 = scmp.eq.s32.totalorder %s28, 0
      %p132 = por %p130, %p131
      %p133 = scmp.ne.s32.totalorder %s125, %s127
      %p134 = scmp.eq.s32.totalorder %s33, 1
      %p135 = por %p133, %p134
      %p136 = scmp.ne.s32.totalorder %s127, %s128
      %p137 = scmp.eq.s32.totalorder %s33, 0
      %p138 = por %p136, %p137
      %p139 = scmp.ne.s32.totalorder %s127, %s128
      %p140 = scmp.eq.s32.totalorder %s34, 1
      %p141 = por %p139, %p140
      %p143 = scmp.ne.s32.totalorder %s128, %s142
      %p144 = scmp.eq.s32.totalorder %s34, 0
      %p145 = por %p143, %p144
      %s147 = sadd.s32 %s146, 1
      %p150 = scmp.eq.s32.totalorder %s28, 1
      %p151 = scmp.ne.s32.totalorder %s146, %s148
      %p152 = scmp.eq.s32.totalorder %s28, 0
      %p153 = por %p151, %p152
      %p154 = scmp.ne.s32.totalorder %s146, %s148
      %p155 = scmp.eq.s32.totalorder %s33, 1
      %p156 = por %p154, %p155
      %p157 = scmp.ne.s32.totalorder %s148, %s149
      %p158 = scmp.eq.s32.totalorder %s33, 0
      %p159 = por %p157, %p158
      %p160 = scmp.ne.s32.totalorder %s148, %s149
      %p161 = scmp.eq.s32.totalorder %s34, 1
      %p162 = por %p160, %p161
      %p164 = scmp.ne.s32.totalorder %s149, %s163
      %p165 = scmp.eq.s32.totalorder %s34, 0
      %p166 = por %p164, %p165
      %s168 = sadd.s32 %s167, 1
      %p171 = scmp.eq.s32.totalorder %s28, 1
      %p172 = scmp.ne.s32.totalorder %s167, %s169
      %p173 = scmp.eq.s32.totalorder %s28, 0
      %p174 = por %p172, %p173
      %p175 = scmp.ne.s32.totalorder %s167, %s169
      %p176 = scmp.eq.s32.totalorder %s33, 1
      %p177 = por %p175, %p176
      %p178 = scmp.ne.s32.totalorder %s169, %s170
      %p179 = scmp.eq.s32.totalorder %s33, 0
      %p180 = por %p178, %p179
      %p181 = scmp.ne.s32.totalorder %s169, %s170
      %p182 = scmp.eq.s32.totalorder %s34, 1
      %p183 = por %p181, %p182
      %p185 = scmp.ne.s32.totalorder %s170, %s184
      %p186 = scmp.eq.s32.totalorder %s34, 0
      %p187 = por %p185, %p186
      %s189 = sadd.s32 %s188, 1
      %p192 = scmp.eq.s32.totalorder %s28, 1
      %p193 = scmp.ne.s32.totalorder %s188, %s190
      %p194 = scmp.eq.s32.totalorder %s28, 0
      %p195 = por %p193, %p194
      %p196 = scmp.ne.s32.totalorder %s188, %s190
      %p197 = scmp.eq.s32.totalorder %s33, 1
      %p198 = por %p196, %p197
      %p199 = scmp.ne.s32.totalorder %s190, %s191
      %p200 = scmp.eq.s32.totalorder %s33, 0
      %p201 = por %p199, %p200
      %p202 = scmp.ne.s32.totalorder %s190, %s191
      %p203 = scmp.eq.s32.totalorder %s34, 1
      %p204 = por %p202, %p203
      %p206 = scmp.ne.s32.totalorder %s191, %s205
      %p207 = scmp.eq.s32.totalorder %s34, 0
      %p208 = por %p206, %p207
      %s209 = ssub.s32 %s28, %s35
      %p210 = scmp.eq.s32.totalorder %s209, 0
      %s212 = sadd.s32 %s211, 1
      %s213 = scalar_select %p210, %s211, %s212
      %p216 = pneg %p210
      %p217 = scmp.eq.s32.totalorder %s28, 1
      %p218 = por %p216, %p217
      %p219 = scmp.ne.s32.totalorder %s211, %s214
      %p220 = scmp.eq.s32.totalorder %s28, 0
      %p221 = por %p219, %p220
      %p222 = scmp.ne.s32.totalorder %s211, %s214
      %p223 = scmp.eq.s32.totalorder %s33, 1
      %p224 = por %p222, %p223
      %p225 = scmp.ne.s32.totalorder %s214, %s215
      %p226 = scmp.eq.s32.totalorder %s33, 0
      %p227 = por %p225, %p226
      %p228 = scmp.ne.s32.totalorder %s214, %s215
      %p229 = scmp.eq.s32.totalorder %s34, 1
      %p230 = por %p228, %p229
      %p232 = scmp.ne.s32.totalorder %s215, %s231
      %p233 = scmp.eq.s32.totalorder %s34, 0
      %p234 = por %p232, %p233
      %s235 = ssub.s32 %s28, %s35
      %p236 = scmp.eq.s32.totalorder %s235, 0
      %s238 = sadd.s32 %s237, 1
      %s239 = scalar_select %p236, %s237, %s238
      %p242 = pneg %p236
      %p243 = scmp.eq.s32.totalorder %s28, 1
      %p244 = por %p242, %p243
      %p245 = scmp.ne.s32.totalorder %s237, %s240
      %p246 = scmp.eq.s32.totalorder %s28, 0
      %p247 = por %p245, %p246
      %p248 = scmp.ne.s32.totalorder %s237, %s240
      %p249 = scmp.eq.s32.totalorder %s33, 1
      %p250 = por %p248, %p249
      %p251 = scmp.ne.s32.totalorder %s240, %s241
      %p252 = scmp.eq.s32.totalorder %s33, 0
      %p253 = por %p251, %p252
      %p254 = scmp.ne.s32.totalorder %s240, %s241
      %p255 = scmp.eq.s32.totalorder %s34, 1
      %p256 = por %p254, %p255
      %p258 = scmp.ne.s32.totalorder %s241, %s257
      %p259 = scmp.eq.s32.totalorder %s34, 0
      %p260 = por %p258, %p259
      %s261 = ssub.s32 %s28, %s35
      %p262 = scmp.eq.s32.totalorder %s261, 0
      %s264 = sadd.s32 %s263, 1
      %s265 = scalar_select %p262, %s263, %s264
      %p268 = pneg %p262
      %p269 = scmp.eq.s32.totalorder %s28, 1
      %p270 = por %p268, %p269
      %p271 = scmp.ne.s32.totalorder %s263, %s266
      %p272 = scmp.eq.s32.totalorder %s28, 0
      %p273 = por %p271, %p272
      %p274 = scmp.ne.s32.totalorder %s263, %s266
      %p275 = scmp.eq.s32.totalorder %s33, 1
      %p276 = por %p274, %p275
      %p277 = scmp.ne.s32.totalorder %s266, %s267
      %p278 = scmp.eq.s32.totalorder %s33, 0
      %p279 = por %p277, %p278
      %p280 = scmp.ne.s32.totalorder %s266, %s267
      %p281 = scmp.eq.s32.totalorder %s34, 1
      %p282 = por %p280, %p281
      %p284 = scmp.ne.s32.totalorder %s267, %s283
      %p285 = scmp.eq.s32.totalorder %s34, 0
      %p286 = por %p284, %p285
      %p287 = scmp.le.s32.totalorder 1, %s28
      %p288 = scmp.lt.s32.totalorder %s28, 3
      %p289 = pnand %p287, %p288
      %p290 = pneg %p289
      // Predicated region
      $region9: #{tpu_custom_call.1} parent=5 // pred_check
        _
      $region10: #{tpu_custom_call.1} parent=5 // pred_check_branch
        %292 = sbr.rel (%p289) target = $region12
      $region11: #{tpu_custom_call.1} parent=5 // pred_region
        %s293 = ssub.s32 %s28, 1
        // Predicated region
        $region13: #{tpu_custom_call.1} parent=11 // pred_check
          %p294 = pneg %p75
        $region14: #{tpu_custom_call.1} parent=11 // pred_check_branch
          %296 = sbr.rel (%p294) target = $region16
        $region15: #{tpu_custom_call.1} parent=11 // pred_region
          %s298 = ssub.s32 512, 512
          %299 = vsyncadd [#allocation6], %s298
          %s300 = sshll.u32 [#allocation5], 4
          %s301 = int_to_ptr.vmem [resolvable:$true] %s300
          %306 = dma.hbm_to_vmem [thread:$0]  %s1, 512, %s301, [#allocation6], 128, 128, 8
        $region16: #{tpu_custom_call.1} parent=11 // pred_fallthru
          _
        // Predicated region
        $region17: #{tpu_custom_call.1} parent=11 // pred_check
          %p307 = pneg %p96
        $region18: #{tpu_custom_call.1} parent=11 // pred_check_branch
          %309 = sbr.rel (%p307) target = $region20
        $region19: #{tpu_custom_call.1} parent=11 // pred_region
          _
        $region20: #{tpu_custom_call.1} parent=11 // pred_fallthru
          _
        // Predicated region
        $region21: #{tpu_custom_call.1} parent=11 // pred_check
          %p310 = pneg %p117
        $region22: #{tpu_custom_call.1} parent=11 // pred_check_branch
          %312 = sbr.rel (%p310) target = $region24
        $region23: #{tpu_custom_call.1} parent=11 // pred_region
          _
        $region24: #{tpu_custom_call.1} parent=11 // pred_fallthru
          _
        // Predicated region
        $region25: #{tpu_custom_call.1} parent=11 // pred_check
          %p313 = pneg %p138
        $region26: #{tpu_custom_call.1} parent=11 // pred_check_branch
          %315 = sbr.rel (%p313) target = $region28
        $region27: #{tpu_custom_call.1} parent=11 // pred_region
          %s317 = ssub.s32 2048, 2048
          %318 = vsyncadd [#allocation6], %s317
          %s319 = sshll.u32 [#allocation7], 4
          %s320 = int_to_ptr.vmem [resolvable:$true] %s319
          %325 = dma.hbm_to_vmem [thread:$0]  %s4, 2048, %s320, [#allocation6], 512, 512, 32
        $region28: #{tpu_custom_call.1} parent=11 // pred_fallthru
          _
        // Predicated region
        $region29: #{tpu_custom_call.1} parent=11 // pred_check
          %p326 = pneg %p159
        $region30: #{tpu_custom_call.1} parent=11 // pred_check_branch
          %328 = sbr.rel (%p326) target = $region32
        $region31: #{tpu_custom_call.1} parent=11 // pred_region
          _
        $region32: #{tpu_custom_call.1} parent=11 // pred_fallthru
          _
        // Predicated region
        $region33: #{tpu_custom_call.1} parent=11 // pred_check
          %p329 = pneg %p180
        $region34: #{tpu_custom_call.1} parent=11 // pred_check_branch
          %331 = sbr.rel (%p329) target = $region36
        $region35: #{tpu_custom_call.1} parent=11 // pred_region
          _
        $region36: #{tpu_custom_call.1} parent=11 // pred_fallthru
          _
        // Predicated region
        $region37: #{tpu_custom_call.1} parent=11 // pred_check
          %p332 = pneg %p201
        $region38: #{tpu_custom_call.1} parent=11 // pred_check_branch
          %334 = sbr.rel (%p332) target = $region40
        $region39: #{tpu_custom_call.1} parent=11 // pred_region
          %s336 = ssub.s32 2048, 2048
          %337 = vsyncadd [#allocation9], %s336
          %s338 = sshll.u32 [#allocation8], 4
          %s339 = int_to_ptr.vmem [resolvable:$true] %s338
          %344 = dma.hbm_to_vmem [thread:$0]  %s7, 2048, %s339, [#allocation9], 128, 128, 8
        $region40: #{tpu_custom_call.1} parent=11 // pred_fallthru
          _
      $region12: #{tpu_custom_call.1} parent=5 // pred_fallthru
        _
      %p345 = scmp.lt.s32.totalorder %s28, 2
      // Predicated region
      $region41: #{tpu_custom_call.1} parent=5 // pred_check
        %p346 = pneg %p345
      $region42: #{tpu_custom_call.1} parent=5 // pred_check_branch
        %348 = sbr.rel (%p346) target = $region44
      $region43: #{tpu_custom_call.1} parent=5 // pred_region
        // Predicated region
        $region45: #{tpu_custom_call.1} parent=43 // pred_check
          %p349 = pneg %p48
        $region46: #{tpu_custom_call.1} parent=43 // pred_check_branch
          %351 = sbr.rel (%p349) target = $region48
        $region47: #{tpu_custom_call.1} parent=43 // pred_region
          %s352 = sand.u32 %s38, 1
          %s353 = scalar_lea.sflag [#allocation3], %s352
          %s354 = sand.u32 %s38, 1
          %s355 = smul.addr %s354, 64
          %s356 = scalar_lea.vmem [#allocation2], %s355
          %s357 = smul.u32 8, %s28
          %s359 = ssub.s32 1024, 1024
          %360 = vsyncadd %s353, %s359
          %s361 = smul.addr %s357, 128
          %s362 = scalar_lea.hbm %s0, %s361
          %s363 = sshll.u32 %s356, 4
          %s364 = int_to_ptr.vmem [resolvable:$true] %s363
          %369 = dma.hbm_to_vmem [thread:$0]  %s362, 1024, %s364, %s353, 128, 128, 8
        $region48: #{tpu_custom_call.1} parent=43 // pred_fallthru
          _
      $region44: #{tpu_custom_call.1} parent=5 // pred_fallthru
        _
      %p370 = scmp.le.s32.totalorder 1, %s28
      %p371 = scmp.lt.s32.totalorder %s28, 3
      %p372 = pnand %p370, %p371
      %p373 = pneg %p372
      // Predicated region
      $region49: #{tpu_custom_call.1} parent=5 // pred_check
        _
      $region50: #{tpu_custom_call.1} parent=5 // pred_check_branch
        %375 = sbr.rel (%p372) target = $region52
      $region51: #{tpu_custom_call.1} parent=5 // pred_region
        %s376 = ssub.s32 %s28, 1
        %s377 = sand.u32 %s41, 1
        %s378 = scalar_lea.sflag [#allocation3], %s377
        %s379 = sand.u32 %s41, 1
        %s380 = smul.addr %s379, 64
        %s381 = scalar_lea.vmem [#allocation2], %s380
        // Predicated region
        $region53: #{tpu_custom_call.1} parent=51 // pred_check
          %p382 = pneg %p54
        $region54: #{tpu_custom_call.1} parent=51 // pred_check_branch
          %384 = sbr.rel (%p382) target = $region56
        $region55: #{tpu_custom_call.1} parent=51 // pred_region
          %385 = dma.done %s378, 1024
        $region56: #{tpu_custom_call.1} parent=51 // pred_fallthru
          _
        // Predicated region
        $region57: #{tpu_custom_call.1} parent=51 // pred_check
          %p386 = pneg %p75
        $region58: #{tpu_custom_call.1} parent=51 // pred_check_branch
          %388 = sbr.rel (%p386) target = $region60
        $region59: #{tpu_custom_call.1} parent=51 // pred_region
          %389 = dma.done [#allocation6], 512
        $region60: #{tpu_custom_call.1} parent=51 // pred_fallthru
          _
        // Predicated region
        $region61: #{tpu_custom_call.1} parent=51 // pred_check
          %p390 = pneg %p138
        $region62: #{tpu_custom_call.1} parent=51 // pred_check_branch
          %392 = sbr.rel (%p390) target = $region64
        $region63: #{tpu_custom_call.1} parent=51 // pred_region
          %393 = dma.done [#allocation6], 2048
        $region64: #{tpu_custom_call.1} parent=51 // pred_fallthru
          _
        // Predicated region
        $region65: #{tpu_custom_call.1} parent=51 // pred_check
          %p394 = pneg %p201
        $region66: #{tpu_custom_call.1} parent=51 // pred_check_branch
          %396 = sbr.rel (%p394) target = $region68
        $region67: #{tpu_custom_call.1} parent=51 // pred_region
          %397 = dma.done [#allocation9], 2048
        $region68: #{tpu_custom_call.1} parent=51 // pred_fallthru
          _
        %s398 = sand.u32 %s41, 1
        %s399 = scalar_lea.sflag [#allocation3], %s398
        %s400 = sand.u32 %s41, 1
        %s401 = smul.addr %s400, 64
        %s402 = scalar_lea.vmem [#allocation2], %s401
        %p403 = pneg %p54
        %p404 = pneg %p51
        %p405 = pneg %p75
        %p406 = pneg %p72
        %p407 = pneg %p96
        %p408 = pneg %p93
        %p409 = pneg %p117
        %p410 = pneg %p114
        %p411 = pneg %p138
        %p412 = pneg %p135
        %p413 = pneg %p159
        %p414 = pneg %p156
        %p415 = pneg %p180
        %p416 = pneg %p177
        %p417 = pneg %p201
        %p418 = pneg %p198
        %p419 = pneg %p227
        %p420 = pneg %p224
        %s421 = sand.u32 %s214, 1
        %s422 = scalar_lea.sflag [#allocation4], %s421
        %s423 = sand.u32 %s214, 1
        %s424 = smul.addr %s423, 8
        %s425 = scalar_lea.vmem [#allocation10], %s424
        %p426 = pneg %p253
        %p427 = pneg %p250
        %s428 = sand.u32 %s33, 1
        %s429 = scalar_lea.sflag [#allocation12], %s428
        %s430 = sand.u32 %s240, 1
        %s431 = smul.addr %s430, 8
        %s432 = scalar_lea.vmem [#allocation11], %s431
        %p433 = pneg %p279
        %p434 = pneg %p276
        %s435 = sand.u32 %s33, 1
        %s436 = scalar_lea.sflag [#allocation12], %s435
        %s437 = sand.u32 %s266, 1
        %s438 = smul.addr %s437, 8
        %s439 = scalar_lea.vmem [#allocation13], %s438
        %s440 = smul.u32 8, %s33
        %v441 = vld [vmem:[%s381] sm:$0xff]
        %v442 = vld [vmem:[%s381 + $0x8] sm:$0xff]
        %v443 = vld [vmem:[%s381 + $0x10] sm:$0xff]
        %v444 = vld [vmem:[%s381 + $0x18] sm:$0xff]
        %v445 = vld [vmem:[%s381 + $0x20] sm:$0xff]
        %v446 = vld [vmem:[%s381 + $0x28] sm:$0xff]
        %v447 = vld [vmem:[%s381 + $0x30] sm:$0xff]
        %v448 = vld [vmem:[%s381 + $0x38] sm:$0xff]
        %v449 = vld [vmem:[#allocation5] sm:$0xff]
        %v450 = vld [vmem:[#allocation5 + $0x8] sm:$0xff]
        %v451 = vld [vmem:[#allocation5 + $0x10] sm:$0xff]
        %v452 = vld [vmem:[#allocation5 + $0x18] sm:$0xff]
        %v453 = vld [vmem:[%s2] sm:$0x1]
        %v455 = vlaneseq
        %v456 = vshrl.u32 %v455, 7
        %v457 = vsub.s32 0, %v456
        %v458 = vrot.slane %v453, %v457
        %vm460 = vcmask 261120
        %v462 = vsel %vm460, %v441, 0
        %v465 = vsel %vm460, %v442, 0
        %v468 = vsel %vm460, %v443, 0
        %v471 = vsel %vm460, %v444, 0
        %v474 = vsel %vm460, %v445, 0
        %v477 = vsel %vm460, %v446, 0
        %v480 = vsel %vm460, %v447, 0
        %v483 = vsel %vm460, %v448, 0
        %485 = vmatprep.subr.mxu0 0.0
        %486 = vmatpush1.msra.mxu0 0.0
        %487 = vmatprep.subr.mxu0 0.0
        %488 = vmatpush1.msra.mxu0 0.0
        %489 = vmatprep.subr.mxu0 0.0
        %490 = vmatpush1.msra.mxu0 0.0
        %491 = vmatprep.subr.mxu0 0.0
        %492 = vmatpush1.msra.mxu0 0.0
        %493 = vmatprep.subr.mxu0 0.0
        %494 = vmatpush1.msra.mxu0 0.0
        %495 = vmatprep.subr.mxu0 0.0
        %496 = vmatpush1.msra.mxu0 0.0
        %497 = vmatprep.subr.mxu0 0.0
        %498 = vmatpush1.msra.mxu0 0.0
        %499 = vmatprep.subr.mxu0 0.0
        %500 = vmatpush1.msra.mxu0 0.0
        %501 = vmatprep.subr.mxu0 0.0
        %502 = vmatpush1.msra.mxu0 0.0
        %503 = vmatprep.subr.mxu0 0.0
        %504 = vmatpush1.msra.mxu0 0.0
        %505 = vmatprep.subr.mxu0 0.0
        %506 = vmatpush1.msra.mxu0 0.0
        %507 = vmatprep.subr.mxu0 0.0
        %508 = vmatpush1.msra.mxu0 0.0
        %509 = vmatprep.subr.mxu0 0.0
        %510 = vmatpush1.msra.mxu0 %v452
        %511 = vmatprep.subr.mxu0 0.0
        %512 = vmatpush1.msra.mxu0 %v451
        %513 = vmatprep.subr.mxu0 0.0
        %514 = vmatpush1.msra.mxu0 %v450
        %515 = vmatprep.subr.mxu0 0.0
        %516 = vmatpush1.msra.mxu0 %v449
        %517 = vmatprep.subr.mxu0 0.0
        %518 = vmatpush2.msra.mxu0 0.0
        %519 = vmatprep.subr.mxu0 0.0
        %520 = vmatpush2.msra.mxu0 0.0
        %521 = vmatprep.subr.mxu0 0.0
        %522 = vmatpush2.msra.mxu0 0.0
        %523 = vmatprep.subr.mxu0 0.0
        %524 = vmatpush2.msra.mxu0 0.0
        %525 = vmatprep.subr.mxu0 0.0
        %526 = vmatpush2.msra.mxu0 0.0
        %527 = vmatprep.subr.mxu0 0.0
        %528 = vmatpush2.msra.mxu0 0.0
        %529 = vmatprep.subr.mxu0 0.0
        %530 = vmatpush2.msra.mxu0 0.0
        %531 = vmatprep.subr.mxu0 0.0
        %532 = vmatpush2.msra.mxu0 0.0
        %533 = vmatprep.subr.mxu0 0.0
        %534 = vmatpush2.msra.mxu0 0.0
        %535 = vmatprep.subr.mxu0 0.0
        %536 = vmatpush2.msra.mxu0 0.0
        %537 = vmatprep.subr.mxu0 0.0
        %538 = vmatpush2.msra.mxu0 0.0
        %539 = vmatprep.subr.mxu0 0.0
        %540 = vmatpush2.msra.mxu0 0.0
        %541 = vmatprep.subr.mxu0 0.0
        %542 = vmatpush2.msra.mxu0 0.0
        %543 = vmatprep.subr.mxu0 0.0
        %544 = vmatpush2.msra.mxu0 0.0
        %545 = vmatprep.subr.mxu0 0.0
        %546 = vmatpush2.msra.mxu0 0.0
        %547 = vmatprep.subr.mxu0 0.0
        %548 = vmatpush2.msra.mxu0 0.0
        %549 = vmatprep.mubr.f32.mxu0 0.0
        %550 = vmatmul.mubr.f32.gmra.mxu0 %v462
        %v551 = vpop.f32.mrf.mxu0
        %v552 = vadd.f32 %v458, %v551
        %v553 = vpop.f32.mrf.mxu0
        %554 = vmatprep.mubr.f32.mxu0 0.0
        %555 = vmatmul.mubr.f32.gmra.mxu0 %v465
        %v556 = vpop.f32.mrf.mxu0
        %v557 = vadd.f32 %v458, %v556
        %v558 = vpop.f32.mrf.mxu0
        %559 = vmatprep.mubr.f32.mxu0 0.0
        %560 = vmatmul.mubr.f32.gmra.mxu0 %v468
        %v561 = vpop.f32.mrf.mxu0
        %v562 = vadd.f32 %v458, %v561
        %v563 = vpop.f32.mrf.mxu0
        %564 = vmatprep.mubr.f32.mxu0 0.0
        %565 = vmatmul.mubr.f32.gmra.mxu0 %v471
        %v566 = vpop.f32.mrf.mxu0
        %v567 = vadd.f32 %v458, %v566
        %v568 = vpop.f32.mrf.mxu0
        %569 = vmatprep.mubr.f32.mxu0 0.0
        %570 = vmatmul.mubr.f32.gmra.mxu0 %v474
        %v571 = vpop.f32.mrf.mxu0
        %v572 = vadd.f32 %v458, %v571
        %v573 = vpop.f32.mrf.mxu0
        %574 = vmatprep.mubr.f32.mxu0 0.0
        %575 = vmatmul.mubr.f32.gmra.mxu0 %v477
        %v576 = vpop.f32.mrf.mxu0
        %v577 = vadd.f32 %v458, %v576
        %v578 = vpop.f32.mrf.mxu0
        %579 = vmatprep.mubr.f32.mxu0 0.0
        %580 = vmatmul.mubr.f32.gmra.mxu0 %v480
        %v581 = vpop.f32.mrf.mxu0
        %v582 = vadd.f32 %v458, %v581
        %v583 = vpop.f32.mrf.mxu0
        %584 = vmatprep.mubr.f32.mxu0 0.0
        %585 = vmatmul.mubr.f32.gmra.mxu0 %v483
        %v586 = vpop.f32.mrf.mxu0
        %v587 = vadd.f32 %v458, %v586
        %v588 = vpop.f32.mrf.mxu0
        %589 = vdwg.mxu0
        %v590 = vtanh.pop %v552
        %v591 = vtanh.pop %v557
        %v592 = vtanh.pop %v562
        %v593 = vtanh.pop %v567
        %v594 = vtanh.pop %v572
        %v595 = vtanh.pop %v577
        %v596 = vtanh.pop %v582
        %v597 = vtanh.pop %v587
        %v598 = vld [vmem:[%s3] sm:$0x1]
        %v600 = vlaneseq
        %v601 = vshrl.u32 %v600, 7
        %v602 = vsub.s32 0, %v601
        %v603 = vrot.slane %v598, %v602
        %v605 = vmul.f32 %v590, %v603
        %v606 = vmul.f32 %v591, %v603
        %v607 = vmul.f32 %v592, %v603
        %v608 = vmul.f32 %v593, %v603
        %v609 = vmul.f32 %v594, %v603
        %v610 = vmul.f32 %v595, %v603
        %v611 = vmul.f32 %v596, %v603
        %v612 = vmul.f32 %v597, %v603
        %613 = vadd.xlane.f32.xlu0 %v605
        %v614 = vpop.xlane.xlu0 %613
        %615 = vadd.xlane.f32.xlu0 %v606
        %v616 = vpop.xlane.xlu0 %615
        %617 = vadd.xlane.f32.xlu0 %v607
        %v618 = vpop.xlane.xlu0 %617
        %619 = vadd.xlane.f32.xlu0 %v608
        %v620 = vpop.xlane.xlu0 %619
        %621 = vadd.xlane.f32.xlu0 %v609
        %v622 = vpop.xlane.xlu0 %621
        %623 = vadd.xlane.f32.xlu0 %v610
        %v624 = vpop.xlane.xlu0 %623
        %625 = vadd.xlane.f32.xlu0 %v611
        %v626 = vpop.xlane.xlu0 %625
        %627 = vadd.xlane.f32.xlu0 %v612
        %v628 = vpop.xlane.xlu0 %627
        %v637 = vlaneseq
        %v638 = vand.u32 %v637, 127
        %v639 = vlaneseq
        %v640 = vshrl.u32 %v639, 7
        %v641 = vsub.s32 %v638, %v640
        %v642 = vrot.slane %v614, %v641
        %v643 = vlaneseq
        %v644 = vshrl.u32 %v643, 7
        %v645 = vsub.s32 %v638, %v644
        %v646 = vrot.slane %v616, %v645
        %v647 = vlaneseq
        %v648 = vshrl.u32 %v647, 7
        %v649 = vsub.s32 %v638, %v648
        %v650 = vrot.slane %v618, %v649
        %v651 = vlaneseq
        %v652 = vshrl.u32 %v651, 7
        %v653 = vsub.s32 %v638, %v652
        %v654 = vrot.slane %v620, %v653
        %v655 = vlaneseq
        %v656 = vshrl.u32 %v655, 7
        %v657 = vsub.s32 %v638, %v656
        %v658 = vrot.slane %v622, %v657
        %v659 = vlaneseq
        %v660 = vshrl.u32 %v659, 7
        %v661 = vsub.s32 %v638, %v660
        %v662 = vrot.slane %v624, %v661
        %v663 = vlaneseq
        %v664 = vshrl.u32 %v663, 7
        %v665 = vsub.s32 %v638, %v664
        %v666 = vrot.slane %v626, %v665
        %v667 = vlaneseq
        %v668 = vshrl.u32 %v667, 7
        %v669 = vsub.s32 %v638, %v668
        %v670 = vrot.slane %v628, %v669
        %vm671 = vcmask 1041409
        %v672 = vsel %vm671, %v646, %v642
        %vm673 = vcmask 1042434
        %v674 = vsel %vm673, %v650, %v672
        %vm675 = vcmask 1043459
        %v676 = vsel %vm675, %v654, %v674
        %vm677 = vcmask 1044484
        %v678 = vsel %vm677, %v658, %v676
        %vm679 = vcmask 1045509
        %v680 = vsel %vm679, %v662, %v678
        %vm681 = vcmask 1046534
        %v682 = vsel %vm681, %v666, %v680
        %vm683 = vcmask 1047559
        %v684 = vsel %vm683, %v670, %v682
        %vm686 = vcmask 64512
        %v687 = vsel %vm686, %v684, -inf
        %688 = vmax.xlane.f32.xlu0 %v687
        %v689 = vpop.xlane.xlu0 %688
        %v691 = vlaneseq
        %v692 = vshrl.u32 %v691, 7
        %v693 = vsub.s32 0, %v692
        %v694 = vrot.slane %v689, %v693
        %v695 = vlaneseq
        %v696 = vshrl.u32 %v695, 7
        %v697 = vsub.s32 1, %v696
        %v698 = vrot.slane %v689, %v697
        %v699 = vlaneseq
        %v700 = vshrl.u32 %v699, 7
        %v701 = vsub.s32 2, %v700
        %v702 = vrot.slane %v689, %v701
        %v703 = vlaneseq
        %v704 = vshrl.u32 %v703, 7
        %v705 = vsub.s32 3, %v704
        %v706 = vrot.slane %v689, %v705
        %v707 = vlaneseq
        %v708 = vshrl.u32 %v707, 7
        %v709 = vsub.s32 4, %v708
        %v710 = vrot.slane %v689, %v709
        %v711 = vlaneseq
        %v712 = vshrl.u32 %v711, 7
        %v713 = vsub.s32 5, %v712
        %v714 = vrot.slane %v689, %v713
        %v715 = vlaneseq
        %v716 = vshrl.u32 %v715, 7
        %v717 = vsub.s32 6, %v716
        %v718 = vrot.slane %v689, %v717
        %v719 = vlaneseq
        %v720 = vshrl.u32 %v719, 7
        %v721 = vsub.s32 7, %v720
        %v722 = vrot.slane %v689, %v721
        %v731 = vsub.f32 %v614, %v694
        %v732 = vsub.f32 %v616, %v698
        %v733 = vsub.f32 %v618, %v702
        %v734 = vsub.f32 %v620, %v706
        %v735 = vsub.f32 %v622, %v710
        %v736 = vsub.f32 %v624, %v714
        %v737 = vsub.f32 %v626, %v718
        %v738 = vsub.f32 %v628, %v722
        %v739 = vmul.f32 %v731, 1.442695
        %v740 = vpow.pop %v739
        %v741 = vmul.f32 %v732, 1.442695
        %v742 = vpow.pop %v741
        %v743 = vmul.f32 %v733, 1.442695
        %v744 = vpow.pop %v743
        %v745 = vmul.f32 %v734, 1.442695
        %v746 = vpow.pop %v745
        %v747 = vmul.f32 %v735, 1.442695
        %v748 = vpow.pop %v747
        %v749 = vmul.f32 %v736, 1.442695
        %v750 = vpow.pop %v749
        %v751 = vmul.f32 %v737, 1.442695
        %v752 = vpow.pop %v751
        %v753 = vmul.f32 %v738, 1.442695
        %v754 = vpow.pop %v753
        %763 = vset.pattern.permute.xlu0 0
        %764 = vperm.xlu0 %763, %v740
        %v765 = vpop.permute.xlu0 %764
        %766 = vset.pattern.permute.xlu0 0
        %767 = vperm.xlu0 %766, %v742
        %v768 = vpop.permute.xlu0 %767
        %769 = vset.pattern.permute.xlu0 0
        %770 = vperm.xlu0 %769, %v744
        %v771 = vpop.permute.xlu0 %770
        %772 = vset.pattern.permute.xlu0 0
        %773 = vperm.xlu0 %772, %v746
        %v774 = vpop.permute.xlu0 %773
        %775 = vset.pattern.permute.xlu0 0
        %776 = vperm.xlu0 %775, %v748
        %v777 = vpop.permute.xlu0 %776
        %778 = vset.pattern.permute.xlu0 0
        %779 = vperm.xlu0 %778, %v750
        %v780 = vpop.permute.xlu0 %779
        %781 = vset.pattern.permute.xlu0 0
        %782 = vperm.xlu0 %781, %v752
        %v783 = vpop.permute.xlu0 %782
        %784 = vset.pattern.permute.xlu0 0
        %785 = vperm.xlu0 %784, %v754
        %v786 = vpop.permute.xlu0 %785
        %v787 = vlaneseq
        %v788 = vshrl.u32 %v787, 7
        %v789 = vsub.s32 %v638, %v788
        %v790 = vrot.slane %v765, %v789
        %v791 = vlaneseq
        %v792 = vshrl.u32 %v791, 7
        %v793 = vsub.s32 %v638, %v792
        %v794 = vrot.slane %v768, %v793
        %v795 = vlaneseq
        %v796 = vshrl.u32 %v795, 7
        %v797 = vsub.s32 %v638, %v796
        %v798 = vrot.slane %v771, %v797
        %v799 = vlaneseq
        %v800 = vshrl.u32 %v799, 7
        %v801 = vsub.s32 %v638, %v800
        %v802 = vrot.slane %v774, %v801
        %v803 = vlaneseq
        %v804 = vshrl.u32 %v803, 7
        %v805 = vsub.s32 %v638, %v804
        %v806 = vrot.slane %v777, %v805
        %v807 = vlaneseq
        %v808 = vshrl.u32 %v807, 7
        %v809 = vsub.s32 %v638, %v808
        %v810 = vrot.slane %v780, %v809
        %v811 = vlaneseq
        %v812 = vshrl.u32 %v811, 7
        %v813 = vsub.s32 %v638, %v812
        %v814 = vrot.slane %v783, %v813
        %v815 = vlaneseq
        %v816 = vshrl.u32 %v815, 7
        %v817 = vsub.s32 %v638, %v816
        %v818 = vrot.slane %v786, %v817
        %v819 = vsel %vm671, %v794, %v790
        %v820 = vsel %vm673, %v798, %v819
        %v821 = vsel %vm675, %v802, %v820
        %v822 = vsel %vm677, %v806, %v821
        %v823 = vsel %vm679, %v810, %v822
        %v824 = vsel %vm681, %v814, %v823
        %v825 = vsel %vm683, %v818, %v824
        %v827 = vsel %vm686, %v825, 0.0
        %828 = vadd.xlane.f32.xlu0 %v827
        %v829 = vpop.xlane.xlu0 %828
        %v831 = vlaneseq
        %v832 = vshrl.u32 %v831, 7
        %v833 = vsub.s32 0, %v832
        %v834 = vrot.slane %v829, %v833
        %v835 = vlaneseq
        %v836 = vshrl.u32 %v835, 7
        %v837 = vsub.s32 1, %v836
        %v838 = vrot.slane %v829, %v837
        %v839 = vlaneseq
        %v840 = vshrl.u32 %v839, 7
        %v841 = vsub.s32 2, %v840
        %v842 = vrot.slane %v829, %v841
        %v843 = vlaneseq
        %v844 = vshrl.u32 %v843, 7
        %v845 = vsub.s32 3, %v844
        %v846 = vrot.slane %v829, %v845
        %v847 = vlaneseq
        %v848 = vshrl.u32 %v847, 7
        %v849 = vsub.s32 4, %v848
        %v850 = vrot.slane %v829, %v849
        %v851 = vlaneseq
        %v852 = vshrl.u32 %v851, 7
        %v853 = vsub.s32 5, %v852
        %v854 = vrot.slane %v829, %v853
        %v855 = vlaneseq
        %v856 = vshrl.u32 %v855, 7
        %v857 = vsub.s32 6, %v856
        %v858 = vrot.slane %v829, %v857
        %v859 = vlaneseq
        %v860 = vshrl.u32 %v859, 7
        %v861 = vsub.s32 7, %v860
        %v862 = vrot.slane %v829, %v861
        %v871 = vrcp.pop %v834
        %v872 = vmul.f32 %v740, %v871
        %v873 = vrcp.pop %v838
        %v874 = vmul.f32 %v742, %v873
        %v875 = vrcp.pop %v842
        %v876 = vmul.f32 %v744, %v875
        %v877 = vrcp.pop %v846
        %v878 = vmul.f32 %v746, %v877
        %v879 = vrcp.pop %v850
        %v880 = vmul.f32 %v748, %v879
        %v881 = vrcp.pop %v854
        %v882 = vmul.f32 %v750, %v881
        %v883 = vrcp.pop %v858
        %v884 = vmul.f32 %v752, %v883
        %v885 = vrcp.pop %v862
        %v886 = vmul.f32 %v754, %v885
        %895 = vset.pattern.permute.xlu0 0
        %896 = vperm.xlu0 %895, %v872
        %v897 = vpop.permute.xlu0 %896
        %898 = vset.pattern.permute.xlu0 0
        %899 = vperm.xlu0 %898, %v874
        %v900 = vpop.permute.xlu0 %899
        %901 = vset.pattern.permute.xlu0 0
        %902 = vperm.xlu0 %901, %v876
        %v903 = vpop.permute.xlu0 %902
        %904 = vset.pattern.permute.xlu0 0
        %905 = vperm.xlu0 %904, %v878
        %v906 = vpop.permute.xlu0 %905
        %907 = vset.pattern.permute.xlu0 0
        %908 = vperm.xlu0 %907, %v880
        %v909 = vpop.permute.xlu0 %908
        %910 = vset.pattern.permute.xlu0 0
        %911 = vperm.xlu0 %910, %v882
        %v912 = vpop.permute.xlu0 %911
        %913 = vset.pattern.permute.xlu0 0
        %914 = vperm.xlu0 %913, %v884
        %v915 = vpop.permute.xlu0 %914
        %916 = vset.pattern.permute.xlu0 0
        %917 = vperm.xlu0 %916, %v886
        %v918 = vpop.permute.xlu0 %917
        %v919 = vlaneseq
        %v920 = vshrl.u32 %v919, 7
        %v921 = vsub.s32 %v638, %v920
        %v922 = vrot.slane %v897, %v921
        %v923 = vlaneseq
        %v924 = vshrl.u32 %v923, 7
        %v925 = vsub.s32 %v638, %v924
        %v926 = vrot.slane %v900, %v925
        %v927 = vlaneseq
        %v928 = vshrl.u32 %v927, 7
        %v929 = vsub.s32 %v638, %v928
        %v930 = vrot.slane %v903, %v929
        %v931 = vlaneseq
        %v932 = vshrl.u32 %v931, 7
        %v933 = vsub.s32 %v638, %v932
        %v934 = vrot.slane %v906, %v933
        %v935 = vlaneseq
        %v936 = vshrl.u32 %v935, 7
        %v937 = vsub.s32 %v638, %v936
        %v938 = vrot.slane %v909, %v937
        %v939 = vlaneseq
        %v940 = vshrl.u32 %v939, 7
        %v941 = vsub.s32 %v638, %v940
        %v942 = vrot.slane %v912, %v941
        %v943 = vlaneseq
        %v944 = vshrl.u32 %v943, 7
        %v945 = vsub.s32 %v638, %v944
        %v946 = vrot.slane %v915, %v945
        %v947 = vlaneseq
        %v948 = vshrl.u32 %v947, 7
        %v949 = vsub.s32 %v638, %v948
        %v950 = vrot.slane %v918, %v949
        %v951 = vsel %vm671, %v926, %v922
        %v952 = vsel %vm673, %v930, %v951
        %v953 = vsel %vm675, %v934, %v952
        %v954 = vsel %vm677, %v938, %v953
        %v955 = vsel %vm679, %v942, %v954
        %v956 = vsel %vm681, %v946, %v955
        %v957 = vsel %vm683, %v950, %v956
        %v959 = vsel %vm686, %v957, 0.0
        %960 = vst [vmem:[%s439] sm:$0xff] %v959
        %v969 = vmul.f32 %v897, %v441
        %v970 = vmul.f32 %v900, %v442
        %v971 = vmul.f32 %v903, %v443
        %v972 = vmul.f32 %v906, %v444
        %v973 = vmul.f32 %v909, %v445
        %v974 = vmul.f32 %v912, %v446
        %v975 = vmul.f32 %v915, %v447
        %v976 = vmul.f32 %v918, %v448
        %v977 = vsel %vm460, %v969, 0.0
        %v978 = vrot.slane %v977, 4
        %v979 = vadd.f32 %v977, %v978
        %v980 = vrot.slane %v979, 2
        %v981 = vadd.f32 %v979, %v980
        %v982 = vrot.slane %v981, 1
        %v983 = vadd.f32 %v981, %v982
        %v984 = vsel %vm460, %v970, 0.0
        %v985 = vrot.slane %v984, 4
        %v986 = vadd.f32 %v984, %v985
        %v987 = vrot.slane %v986, 2
        %v988 = vadd.f32 %v986, %v987
        %v989 = vrot.slane %v988, 1
        %v990 = vadd.f32 %v988, %v989
        %v991 = vsel %vm460, %v971, 0.0
        %v992 = vrot.slane %v991, 4
        %v993 = vadd.f32 %v991, %v992
        %v994 = vrot.slane %v993, 2
        %v995 = vadd.f32 %v993, %v994
        %v996 = vrot.slane %v995, 1
        %v997 = vadd.f32 %v995, %v996
        %v998 = vsel %vm460, %v972, 0.0
        %v999 = vrot.slane %v998, 4
        %v1000 = vadd.f32 %v998, %v999
        %v1001 = vrot.slane %v1000, 2
        %v1002 = vadd.f32 %v1000, %v1001
        %v1003 = vrot.slane %v1002, 1
        %v1004 = vadd.f32 %v1002, %v1003
        %v1005 = vsel %vm460, %v973, 0.0
        %v1006 = vrot.slane %v1005, 4
        %v1007 = vadd.f32 %v1005, %v1006
        %v1008 = vrot.slane %v1007, 2
        %v1009 = vadd.f32 %v1007, %v1008
        %v1010 = vrot.slane %v1009, 1
        %v1011 = vadd.f32 %v1009, %v1010
        %v1012 = vsel %vm460, %v974, 0.0
        %v1013 = vrot.slane %v1012, 4
        %v1014 = vadd.f32 %v1012, %v1013
        %v1015 = vrot.slane %v1014, 2
        %v1016 = vadd.f32 %v1014, %v1015
        %v1017 = vrot.slane %v1016, 1
        %v1018 = vadd.f32 %v1016, %v1017
        %v1019 = vsel %vm460, %v975, 0.0
        %v1020 = vrot.slane %v1019, 4
        %v1021 = vadd.f32 %v1019, %v1020
        %v1022 = vrot.slane %v1021, 2
        %v1023 = vadd.f32 %v1021, %v1022
        %v1024 = vrot.slane %v1023, 1
        %v1025 = vadd.f32 %v1023, %v1024
        %v1026 = vsel %vm460, %v976, 0.0
        %v1027 = vrot.slane %v1026, 4
        %v1028 = vadd.f32 %v1026, %v1027
        %v1029 = vrot.slane %v1028, 2
        %v1030 = vadd.f32 %v1028, %v1029
        %v1031 = vrot.slane %v1030, 1
        %v1032 = vadd.f32 %v1030, %v1031
        %v1033 = vld [vmem:[#allocation7] sm:$0xff]
        %v1034 = vld [vmem:[#allocation7 + $0x8] sm:$0xff]
        %v1035 = vld [vmem:[#allocation7 + $0x10] sm:$0xff]
        %v1036 = vld [vmem:[#allocation7 + $0x18] sm:$0xff]
        %v1037 = vld [vmem:[#allocation7 + $0x20] sm:$0xff]
        %v1038 = vld [vmem:[#allocation7 + $0x28] sm:$0xff]
        %v1039 = vld [vmem:[#allocation7 + $0x30] sm:$0xff]
        %v1040 = vld [vmem:[#allocation7 + $0x38] sm:$0xff]
        %v1041 = vld [vmem:[#allocation7 + $0x40] sm:$0xff]
        %v1042 = vld [vmem:[#allocation7 + $0x48] sm:$0xff]
        %v1043 = vld [vmem:[#allocation7 + $0x50] sm:$0xff]
        %v1044 = vld [vmem:[#allocation7 + $0x58] sm:$0xff]
        %v1045 = vld [vmem:[#allocation7 + $0x60] sm:$0xff]
        %v1046 = vld [vmem:[#allocation7 + $0x68] sm:$0xff]
        %v1047 = vld [vmem:[#allocation7 + $0x70] sm:$0xff]
        %v1048 = vld [vmem:[#allocation7 + $0x78] sm:$0xff]
        %v1049 = vld [vmem:[%s5] sm:$0xf]
        %v1051 = vlaneseq
        %v1052 = vshrl.u32 %v1051, 7
        %v1053 = vsub.s32 0, %v1052
        %v1054 = vrot.slane %v1049, %v1053
        %v1055 = vlaneseq
        %v1056 = vshrl.u32 %v1055, 7
        %v1057 = vsub.s32 1, %v1056
        %v1058 = vrot.slane %v1049, %v1057
        %v1059 = vlaneseq
        %v1060 = vshrl.u32 %v1059, 7
        %v1061 = vsub.s32 2, %v1060
        %v1062 = vrot.slane %v1049, %v1061
        %v1063 = vlaneseq
        %v1064 = vshrl.u32 %v1063, 7
        %v1065 = vsub.s32 3, %v1064
        %v1066 = vrot.slane %v1049, %v1065
        %v1079 = vsel %vm671, %v990, %v983
        %v1080 = vsel %vm673, %v997, %v1079
        %v1081 = vsel %vm675, %v1004, %v1080
        %v1082 = vsel %vm677, %v1011, %v1081
        %v1083 = vsel %vm679, %v1018, %v1082
        %v1084 = vsel %vm681, %v1025, %v1083
        %v1085 = vsel %vm683, %v1032, %v1084
        %v1086 = vsel %vm460, %v1085, 0
        %1088 = vmatprep.subr.mxu0 0.0
        %1089 = vmatpush1.msra.mxu0 0.0
        %1090 = vmatprep.subr.mxu0 0.0
        %1091 = vmatpush1.msra.mxu0 0.0
        %1092 = vmatprep.subr.mxu0 0.0
        %1093 = vmatpush1.msra.mxu0 0.0
        %1094 = vmatprep.subr.mxu0 0.0
        %1095 = vmatpush1.msra.mxu0 0.0
        %1096 = vmatprep.subr.mxu0 0.0
        %1097 = vmatpush1.msra.mxu0 0.0
        %1098 = vmatprep.subr.mxu0 0.0
        %1099 = vmatpush1.msra.mxu0 0.0
        %1100 = vmatprep.subr.mxu0 0.0
        %1101 = vmatpush1.msra.mxu0 0.0
        %1102 = vmatprep.subr.mxu0 0.0
        %1103 = vmatpush1.msra.mxu0 0.0
        %1104 = vmatprep.subr.mxu0 0.0
        %1105 = vmatpush1.msra.mxu0 0.0
        %1106 = vmatprep.subr.mxu0 0.0
        %1107 = vmatpush1.msra.mxu0 0.0
        %1108 = vmatprep.subr.mxu0 0.0
        %1109 = vmatpush1.msra.mxu0 0.0
        %1110 = vmatprep.subr.mxu0 0.0
        %1111 = vmatpush1.msra.mxu0 0.0
        %1112 = vmatprep.subr.mxu0 %v1046
        %1113 = vmatpush1.msra.mxu0 %v1045
        %1114 = vmatprep.subr.mxu0 %v1042
        %1115 = vmatpush1.msra.mxu0 %v1041
        %1116 = vmatprep.subr.mxu0 %v1038
        %1117 = vmatpush1.msra.mxu0 %v1037
        %1118 = vmatprep.subr.mxu0 %v1034
        %1119 = vmatpush1.msra.mxu0 %v1033
        %1120 = vmatprep.subr.mxu0 0.0
        %1121 = vmatpush2.msra.mxu0 0.0
        %1122 = vmatprep.subr.mxu0 0.0
        %1123 = vmatpush2.msra.mxu0 0.0
        %1124 = vmatprep.subr.mxu0 0.0
        %1125 = vmatpush2.msra.mxu0 0.0
        %1126 = vmatprep.subr.mxu0 0.0
        %1127 = vmatpush2.msra.mxu0 0.0
        %1128 = vmatprep.subr.mxu0 0.0
        %1129 = vmatpush2.msra.mxu0 0.0
        %1130 = vmatprep.subr.mxu0 0.0
        %1131 = vmatpush2.msra.mxu0 0.0
        %1132 = vmatprep.subr.mxu0 0.0
        %1133 = vmatpush2.msra.mxu0 0.0
        %1134 = vmatprep.subr.mxu0 0.0
        %1135 = vmatpush2.msra.mxu0 0.0
        %1136 = vmatprep.subr.mxu0 0.0
        %1137 = vmatpush2.msra.mxu0 0.0
        %1138 = vmatprep.subr.mxu0 0.0
        %1139 = vmatpush2.msra.mxu0 0.0
        %1140 = vmatprep.subr.mxu0 0.0
        %1141 = vmatpush2.msra.mxu0 0.0
        %1142 = vmatprep.subr.mxu0 0.0
        %1143 = vmatpush2.msra.mxu0 0.0
        %1144 = vmatprep.subr.mxu0 0.0
        %1145 = vmatpush2.msra.mxu0 0.0
        %1146 = vmatprep.subr.mxu0 0.0
        %1147 = vmatpush2.msra.mxu0 0.0
        %1148 = vmatprep.subr.mxu0 0.0
        %1149 = vmatpush2.msra.mxu0 0.0
        %1150 = vmatprep.subr.mxu0 0.0
        %1151 = vmatpush2.msra.mxu0 0.0
        %1152 = vmatprep.mubr.f32.mxu0 0.0
        %1153 = vmatmul.mubr.f32.gmra.mxu0 %v1086
        %v1154 = vpop.f32.mrf.mxu0
        %v1155 = vadd.f32 %v1054, %v1154
        %v1156 = vpop.f32.mrf.mxu0
        %v1157 = vadd.f32 %v1058, %v1156
        %1158 = vdwg.mxu0
        %1159 = vmatprep.subr.mxu0 0.0
        %1160 = vmatpush1.msra.mxu0 0.0
        %1161 = vmatprep.subr.mxu0 0.0
        %1162 = vmatpush1.msra.mxu0 0.0
        %1163 = vmatprep.subr.mxu0 0.0
        %1164 = vmatpush1.msra.mxu0 0.0
        %1165 = vmatprep.subr.mxu0 0.0
        %1166 = vmatpush1.msra.mxu0 0.0
        %1167 = vmatprep.subr.mxu0 0.0
        %1168 = vmatpush1.msra.mxu0 0.0
        %1169 = vmatprep.subr.mxu0 0.0
        %1170 = vmatpush1.msra.mxu0 0.0
        %1171 = vmatprep.subr.mxu0 0.0
        %1172 = vmatpush1.msra.mxu0 0.0
        %1173 = vmatprep.subr.mxu0 0.0
        %1174 = vmatpush1.msra.mxu0 0.0
        %1175 = vmatprep.subr.mxu0 0.0
        %1176 = vmatpush1.msra.mxu0 0.0
        %1177 = vmatprep.subr.mxu0 0.0
        %1178 = vmatpush1.msra.mxu0 0.0
        %1179 = vmatprep.subr.mxu0 0.0
        %1180 = vmatpush1.msra.mxu0 0.0
        %1181 = vmatprep.subr.mxu0 0.0
        %1182 = vmatpush1.msra.mxu0 0.0
        %1183 = vmatprep.subr.mxu0 %v1048
        %1184 = vmatpush1.msra.mxu0 %v1047
        %1185 = vmatprep.subr.mxu0 %v1044
        %1186 = vmatpush1.msra.mxu0 %v1043
        %1187 = vmatprep.subr.mxu0 %v1040
        %1188 = vmatpush1.msra.mxu0 %v1039
        %1189 = vmatprep.subr.mxu0 %v1036
        %1190 = vmatpush1.msra.mxu0 %v1035
        %1191 = vmatprep.subr.mxu0 0.0
        %1192 = vmatpush2.msra.mxu0 0.0
        %1193 = vmatprep.subr.mxu0 0.0
        %1194 = vmatpush2.msra.mxu0 0.0
        %1195 = vmatprep.subr.mxu0 0.0
        %1196 = vmatpush2.msra.mxu0 0.0
        %1197 = vmatprep.subr.mxu0 0.0
        %1198 = vmatpush2.msra.mxu0 0.0
        %1199 = vmatprep.subr.mxu0 0.0
        %1200 = vmatpush2.msra.mxu0 0.0
        %1201 = vmatprep.subr.mxu0 0.0
        %1202 = vmatpush2.msra.mxu0 0.0
        %1203 = vmatprep.subr.mxu0 0.0
        %1204 = vmatpush2.msra.mxu0 0.0
        %1205 = vmatprep.subr.mxu0 0.0
        %1206 = vmatpush2.msra.mxu0 0.0
        %1207 = vmatprep.subr.mxu0 0.0
        %1208 = vmatpush2.msra.mxu0 0.0
        %1209 = vmatprep.subr.mxu0 0.0
        %1210 = vmatpush2.msra.mxu0 0.0
        %1211 = vmatprep.subr.mxu0 0.0
        %1212 = vmatpush2.msra.mxu0 0.0
        %1213 = vmatprep.subr.mxu0 0.0
        %1214 = vmatpush2.msra.mxu0 0.0
        %1215 = vmatprep.subr.mxu0 0.0
        %1216 = vmatpush2.msra.mxu0 0.0
        %1217 = vmatprep.subr.mxu0 0.0
        %1218 = vmatpush2.msra.mxu0 0.0
        %1219 = vmatprep.subr.mxu0 0.0
        %1220 = vmatpush2.msra.mxu0 0.0
        %1221 = vmatprep.subr.mxu0 0.0
        %1222 = vmatpush2.msra.mxu0 0.0
        %1223 = vmatprep.mubr.f32.mxu0 0.0
        %1224 = vmatmul.mubr.f32.gmra.mxu0 %v1086
        %v1225 = vpop.f32.mrf.mxu0
        %v1226 = vadd.f32 %v1062, %v1225
        %v1227 = vpop.f32.mrf.mxu0
        %v1228 = vadd.f32 %v1066, %v1227
        %1229 = vdwg.mxu0
        %v1230 = vxor.u32 %v1155, 2147483648
        %v1231 = vmul.f32 %v1230, 1.442695
        %v1232 = vpow.pop %v1231
        %v1233 = vadd.f32 %v1232, 1.0
        %v1234 = vrcp.pop %v1233
        %v1235 = vmul.f32 1.0, %v1234
        %v1236 = vxor.u32 %v1157, 2147483648
        %v1237 = vmul.f32 %v1236, 1.442695
        %v1238 = vpow.pop %v1237
        %v1239 = vadd.f32 %v1238, 1.0
        %v1240 = vrcp.pop %v1239
        %v1241 = vmul.f32 1.0, %v1240
        %v1242 = vld [vmem:[%s6] sm:$0x1]
        %v1244 = vlaneseq
        %v1245 = vshrl.u32 %v1244, 7
        %v1246 = vsub.s32 0, %v1245
        %v1247 = vrot.slane %v1242, %v1246
        %v1249 = vmul.f32 %v1235, %v1247
        %v1250 = vadd.f32 %v1226, %v1249
        %v1251 = vtanh.pop %v1250
        %v1252 = vsub.f32 1.0, %v1241
        %v1253 = vmul.f32 %v1252, %v1251
        %1254 = vst [vmem:[%s432] sm:$0xff] %v1253
        %v1255 = vld [vmem:[#allocation8] sm:$0xff]
        %v1256 = vld [vmem:[#allocation8 + $0x8] sm:$0xff]
        %v1257 = vld [vmem:[#allocation8 + $0x10] sm:$0xff]
        %v1258 = vld [vmem:[#allocation8 + $0x18] sm:$0xff]
        %v1259 = vld [vmem:[#allocation8 + $0x20] sm:$0xff]
        %v1260 = vld [vmem:[#allocation8 + $0x28] sm:$0xff]
        %v1261 = vld [vmem:[#allocation8 + $0x30] sm:$0xff]
        %v1262 = vld [vmem:[#allocation8 + $0x38] sm:$0xff]
        %v1263 = vld [vmem:[#allocation8 + $0x40] sm:$0xff]
        %v1264 = vld [vmem:[#allocation8 + $0x48] sm:$0xff]
        %v1265 = vld [vmem:[#allocation8 + $0x50] sm:$0xff]
        %v1266 = vld [vmem:[#allocation8 + $0x58] sm:$0xff]
        %v1267 = vld [vmem:[#allocation8 + $0x60] sm:$0xff]
        %v1268 = vld [vmem:[#allocation8 + $0x68] sm:$0xff]
        %v1269 = vld [vmem:[#allocation8 + $0x70] sm:$0xff]
        %v1270 = vld [vmem:[#allocation8 + $0x78] sm:$0xff]
        %1271 = vmatprep.subr.mxu0 0.0
        %1272 = vmatpush1.msra.mxu0 %v1270
        %1273 = vmatprep.subr.mxu0 0.0
        %1274 = vmatpush1.msra.mxu0 %v1269
        %1275 = vmatprep.subr.mxu0 0.0
        %1276 = vmatpush1.msra.mxu0 %v1268
        %1277 = vmatprep.subr.mxu0 0.0
        %1278 = vmatpush1.msra.mxu0 %v1267
        %1279 = vmatprep.subr.mxu0 0.0
        %1280 = vmatpush1.msra.mxu0 %v1266
        %1281 = vmatprep.subr.mxu0 0.0
        %1282 = vmatpush1.msra.mxu0 %v1265
        %1283 = vmatprep.subr.mxu0 0.0
        %1284 = vmatpush1.msra.mxu0 %v1264
        %1285 = vmatprep.subr.mxu0 0.0
        %1286 = vmatpush1.msra.mxu0 %v1263
        %1287 = vmatprep.subr.mxu0 0.0
        %1288 = vmatpush1.msra.mxu0 %v1262
        %1289 = vmatprep.subr.mxu0 0.0
        %1290 = vmatpush1.msra.mxu0 %v1261
        %1291 = vmatprep.subr.mxu0 0.0
        %1292 = vmatpush1.msra.mxu0 %v1260
        %1293 = vmatprep.subr.mxu0 0.0
        %1294 = vmatpush1.msra.mxu0 %v1259
        %1295 = vmatprep.subr.mxu0 0.0
        %1296 = vmatpush1.msra.mxu0 %v1258
        %1297 = vmatprep.subr.mxu0 0.0
        %1298 = vmatpush1.msra.mxu0 %v1257
        %1299 = vmatprep.subr.mxu0 0.0
        %1300 = vmatpush1.msra.mxu0 %v1256
        %1301 = vmatprep.subr.mxu0 0.0
        %1302 = vmatpush1.msra.mxu0 %v1255
        %1303 = vmatprep.subr.mxu0 0.0
        %1304 = vmatpush2.msra.mxu0 0.0
        %1305 = vmatprep.subr.mxu0 0.0
        %1306 = vmatpush2.msra.mxu0 0.0
        %1307 = vmatprep.subr.mxu0 0.0
        %1308 = vmatpush2.msra.mxu0 0.0
        %1309 = vmatprep.subr.mxu0 0.0
        %1310 = vmatpush2.msra.mxu0 0.0
        %1311 = vmatprep.subr.mxu0 0.0
        %1312 = vmatpush2.msra.mxu0 0.0
        %1313 = vmatprep.subr.mxu0 0.0
        %1314 = vmatpush2.msra.mxu0 0.0
        %1315 = vmatprep.subr.mxu0 0.0
        %1316 = vmatpush2.msra.mxu0 0.0
        %1317 = vmatprep.subr.mxu0 0.0
        %1318 = vmatpush2.msra.mxu0 0.0
        %1319 = vmatprep.subr.mxu0 0.0
        %1320 = vmatpush2.msra.mxu0 0.0
        %1321 = vmatprep.subr.mxu0 0.0
        %1322 = vmatpush2.msra.mxu0 0.0
        %1323 = vmatprep.subr.mxu0 0.0
        %1324 = vmatpush2.msra.mxu0 0.0
        %1325 = vmatprep.subr.mxu0 0.0
        %1326 = vmatpush2.msra.mxu0 0.0
        %1327 = vmatprep.subr.mxu0 0.0
        %1328 = vmatpush2.msra.mxu0 0.0
        %1329 = vmatprep.subr.mxu0 0.0
        %1330 = vmatpush2.msra.mxu0 0.0
        %1331 = vmatprep.subr.mxu0 0.0
        %1332 = vmatpush2.msra.mxu0 0.0
        %1333 = vmatprep.subr.mxu0 0.0
        %1334 = vmatpush2.msra.mxu0 0.0
        %1335 = vmatprep.mubr.f32.mxu0 0.0
        %1336 = vmatmul.mubr.f32.gmra.mxu0 %v1253
        %v1337 = vpop.f32.mrf.mxu0
        %v1338 = vadd.f32 %v1228, %v1337
        %v1339 = vpop.f32.mrf.mxu0
        %1340 = vdwg.mxu0
        %1341 = vst [vmem:[%s425] sm:$0xff] %v1338
        %s1342 = sand.u32 %s214, 1
        %s1343 = scalar_lea.sflag [#allocation4], %s1342
        %s1344 = sand.u32 %s214, 1
        %s1345 = smul.addr %s1344, 8
        %s1346 = scalar_lea.vmem [#allocation10], %s1345
        %s1347 = sand.u32 %s33, 1
        %s1348 = scalar_lea.sflag [#allocation12], %s1347
        %s1349 = sand.u32 %s240, 1
        %s1350 = smul.addr %s1349, 8
        %s1351 = scalar_lea.vmem [#allocation11], %s1350
        %s1352 = sand.u32 %s33, 1
        %s1353 = scalar_lea.sflag [#allocation12], %s1352
        %s1354 = sand.u32 %s266, 1
        %s1355 = smul.addr %s1354, 8
        %s1356 = scalar_lea.vmem [#allocation13], %s1355
        // Predicated region
        $region69: #{tpu_custom_call.1} parent=51 // pred_check
          %p1357 = pneg %p224
        $region70: #{tpu_custom_call.1} parent=51 // pred_check_branch
          %1359 = sbr.rel (%p1357) target = $region72
        $region71: #{tpu_custom_call.1} parent=51 // pred_region
          %s1361 = ssub.s32 128, 128
          %1362 = vsyncadd %s1343, %s1361
          %s1363 = smul.addr %s33, 128
          %s1364 = scalar_lea.hbm %s8, %s1363
          %s1366 = sshll.u32 %s1346, 4
          %s1367 = int_to_ptr.vmem [resolvable:$true] %s1366
          %1369 = dma.vmem_to_hbm [thread:$0]  %s1367, 128, %s1364, %s1343
        $region72: #{tpu_custom_call.1} parent=51 // pred_fallthru
          _
        // Predicated region
        $region73: #{tpu_custom_call.1} parent=51 // pred_check
          %p1370 = pneg %p250
        $region74: #{tpu_custom_call.1} parent=51 // pred_check_branch
          %1372 = sbr.rel (%p1370) target = $region76
        $region75: #{tpu_custom_call.1} parent=51 // pred_region
          %s1374 = ssub.s32 128, 128
          %1375 = vsyncadd %s1348, %s1374
          %s1376 = smul.addr %s33, 128
          %s1377 = scalar_lea.hbm %s9, %s1376
          %s1379 = sshll.u32 %s1351, 4
          %s1380 = int_to_ptr.vmem [resolvable:$true] %s1379
          %1382 = dma.vmem_to_hbm [thread:$0]  %s1380, 128, %s1377, %s1348
        $region76: #{tpu_custom_call.1} parent=51 // pred_fallthru
          _
        // Predicated region
        $region77: #{tpu_custom_call.1} parent=51 // pred_check
          %p1383 = pneg %p276
        $region78: #{tpu_custom_call.1} parent=51 // pred_check_branch
          %1385 = sbr.rel (%p1383) target = $region80
        $region79: #{tpu_custom_call.1} parent=51 // pred_region
          %s1387 = ssub.s32 128, 128
          %1388 = vsyncadd %s1353, %s1387
          %s1389 = smul.addr %s33, 128
          %s1390 = scalar_lea.hbm %s10, %s1389
          %s1392 = sshll.u32 %s1356, 4
          %s1393 = int_to_ptr.vmem [resolvable:$true] %s1392
          %1395 = dma.vmem_to_hbm [thread:$0]  %s1393, 128, %s1390, %s1353
        $region80: #{tpu_custom_call.1} parent=51 // pred_fallthru
          _
      $region52: #{tpu_custom_call.1} parent=5 // pred_fallthru
        _
      %p1396 = scmp.le.s32.totalorder 2, %s28
      // Predicated region
      $region81: #{tpu_custom_call.1} parent=5 // pred_check
        %p1397 = pneg %p1396
      $region82: #{tpu_custom_call.1} parent=5 // pred_check_branch
        %1399 = sbr.rel (%p1397) target = $region84
      $region83: #{tpu_custom_call.1} parent=5 // pred_region
        %s1400 = ssub.s32 %s28, 2
        // Predicated region
        $region85: #{tpu_custom_call.1} parent=83 // pred_check
          %p1401 = pneg %p230
        $region86: #{tpu_custom_call.1} parent=83 // pred_check_branch
          %1403 = sbr.rel (%p1401) target = $region88
        $region87: #{tpu_custom_call.1} parent=83 // pred_region
          %s1404 = sand.u32 %s215, 1
          %s1405 = scalar_lea.sflag [#allocation4], %s1404
          %s1406 = sand.u32 %s215, 1
          %s1407 = smul.addr %s1406, 8
          %s1408 = scalar_lea.vmem [#allocation10], %s1407
          %1409 = dma.done %s1405, 128
        $region88: #{tpu_custom_call.1} parent=83 // pred_fallthru
          _
        // Predicated region
        $region89: #{tpu_custom_call.1} parent=83 // pred_check
          %p1410 = pneg %p256
        $region90: #{tpu_custom_call.1} parent=83 // pred_check_branch
          %1412 = sbr.rel (%p1410) target = $region92
        $region91: #{tpu_custom_call.1} parent=83 // pred_region
          %s1413 = sand.u32 %s34, 1
          %s1414 = scalar_lea.sflag [#allocation12], %s1413
          %s1415 = sand.u32 %s241, 1
          %s1416 = smul.addr %s1415, 8
          %s1417 = scalar_lea.vmem [#allocation11], %s1416
          %1418 = dma.done %s1414, 128
        $region92: #{tpu_custom_call.1} parent=83 // pred_fallthru
          _
        // Predicated region
        $region93: #{tpu_custom_call.1} parent=83 // pred_check
          %p1419 = pneg %p282
        $region94: #{tpu_custom_call.1} parent=83 // pred_check_branch
          %1421 = sbr.rel (%p1419) target = $region96
        $region95: #{tpu_custom_call.1} parent=83 // pred_region
          %s1422 = sand.u32 %s34, 1
          %s1423 = scalar_lea.sflag [#allocation12], %s1422
          %s1424 = sand.u32 %s267, 1
          %s1425 = smul.addr %s1424, 8
          %s1426 = scalar_lea.vmem [#allocation13], %s1425
          %1427 = dma.done %s1423, 128
        $region96: #{tpu_custom_call.1} parent=83 // pred_fallthru
          _
      $region84: #{tpu_custom_call.1} parent=5 // pred_fallthru
        _
    $region6: #{tpu_custom_call.1} parent=1 // loop_footer
      %s32 = sadd.s32 1, %s28
    $region7: #{tpu_custom_call.1} parent=1 // loop_footer_branch
      %27 = sbr.rel target = $region3
    $region8: #{tpu_custom_call.1} parent=1 // loop_exit
      _
    %1428 = vsyncpa [#allocation3], 1
    %s1429 = scalar_lea.sflag [#allocation3], 1
    %1430 = vsyncpa %s1429, 1
    %1431 = vsyncpa [#allocation6], 1
    %1432 = vsyncpa [#allocation9], 1
    %1433 = vsyncpa [#allocation4], 1
    %s1434 = scalar_lea.sflag [#allocation4], 1
    %1435 = vsyncpa %s1434, 1
    %1436 = vsyncpa [#allocation12], 1
    %s1437 = scalar_lea.sflag [#allocation12], 1
    %1438 = vsyncpa %s1437, 1

</llo_original>
